<compile_context>
chip_gen: v6e
topology: v6e:2x2x1
jax: 0.10.0
libtpu: 0.0.40
codegen_flags: <defaults>
</compile_context>

<pallas_src>
import jax
import jax.numpy as jnp
from jax.experimental import pallas as pl
from jax.experimental.pallas import tpu as pltpu

_EPS = 1e-5  # torch nn.GroupNorm default


def _make_kernel(Nb, Ns, H, W, Cin, Cmid, Cfin, apply_conv3, cpg1, cpg2):
    Hp, Wp = H + 2, W + 2
    Lp = Hp * Wp
    L = Nb * Lp
    HW = H * W
    # 3x3 tap offsets in the padded flat spatial index (dh*Wp + dw), tap-major order.
    deltas = tuple((kh - 1) * Wp + (kw - 1) for kh in range(3) for kw in range(3))
    off = Wp + 1  # = max |delta|

    def _im2col(a):
        # a: (C, L) activation in zero-padded spatial layout.  Returns (9*C, L) where rows
        # [t*C:(t+1)*C] are the activation shifted by deltas[t] along the lane axis
        # (out[:, l] = a[:, l + d]); end spill-over only lands on border output lanes.
        C = a.shape[0]
        z = jnp.zeros((C, off), a.dtype)
        aw = jnp.concatenate([z, a, z], axis=1)                      # (C, L + 2*off)
        return jnp.concatenate(
            [aw[:, off + d: off + d + L] for d in deltas], axis=0)   # (9*C, L)

    def _lane_bcast(stat_cn, bcast):
        # (C, Ns) per-image stats -> (C, L) broadcast over each image's lanes (pure VPU).
        out = stat_cn[:, 0:1] * bcast[0:1, :]
        for n in range(1, Ns):
            out = out + stat_cn[:, n:n + 1] * bcast[n:n + 1, :]
        return out

    def _group_norm(y, sel, bcast, grp, gamma, beta, cpg):
        # y: (C, L); sel: (L, Ns) interior-of-image selector; bcast: (Ns, L); grp: (C, C)
        # same-group indicator; gamma/beta: (C, 1).  Two-pass, biased variance (torch GN).
        inv_n = 1.0 / float(HW * cpg)
        s_cn = jnp.dot(y, sel, preferred_element_type=jnp.float32)             # (C, Ns)
        mean_cn = jnp.dot(grp, s_cn, preferred_element_type=jnp.float32) * inv_n
        yc = y - _lane_bcast(mean_cn, bcast)
        ss_cn = jnp.dot(yc * yc, sel, preferred_element_type=jnp.float32)      # (C, Ns)
        var_cn = jnp.dot(grp, ss_cn, preferred_element_type=jnp.float32) * inv_n
        inv_cn = jax.lax.rsqrt(var_cn + _EPS)
        return yc * _lane_bcast(inv_cn, bcast) * gamma + beta

    def kernel(x_ref, w1_ref, g1_ref, b1_ref, w2_ref, g2_ref, b2_ref,
               w3_ref, b3_ref, sel_ref, bcast_ref, grp1_ref, grp2_ref, out_ref):
        sel = sel_ref[...]                                   # (L, Ns)
        bcast = bcast_ref[...]                               # (Ns, L)
        imask = jnp.sum(bcast, axis=0, keepdims=True)        # (1, L): 1 at interior lanes

        # ---- conv1: 3x3, pad=1, no bias, Cin -> Cin (single K=9*Cin weight-stationary dot)
        col1 = _im2col(x_ref[...])                                              # (9*Cin, L)
        acc1 = jnp.dot(w1_ref[...], col1, preferred_element_type=jnp.float32)   # (Cin, L)

        # ---- GroupNorm1 + ReLU; re-zero the padded border so conv2 sees true zero padding
        y1 = _group_norm(acc1, sel, bcast, grp1_ref[...], g1_ref[...], b1_ref[...], cpg1)
        y1 = jnp.maximum(y1, 0.0) * imask

        # ---- conv2: 3x3, pad=1, no bias, Cin -> Cmid
        col2 = _im2col(y1)
        acc2 = jnp.dot(w2_ref[...], col2, preferred_element_type=jnp.float32)   # (Cmid, L)

        # ---- GroupNorm2
        y2 = _group_norm(acc2, sel, bcast, grp2_ref[...], g2_ref[...], b2_ref[...], cpg2)

        # ---- conv3 (1x1 with bias, only when inner_channel != out_channels) + residual
        if apply_conv3:
            y3 = jnp.dot(w3_ref[...], y2, preferred_element_type=jnp.float32) + b3_ref[...]
        else:
            y3 = y2
        # residual: reload x here (do not pin it across the body); border lanes are garbage
        # and get sliced off by the wrapper.
        out_ref[...] = y3 + x_ref[...]

    return kernel


def basic_block_forward(x_nchw, params, in_channels, inner_channel, out_channels):
    N, Cin, H, W = x_nchw.shape
    assert Cin == in_channels
    assert in_channels >= 8 and in_channels % 8 == 0, "GroupNorm groups = in_channels // 8"
    G = in_channels // 8
    Cmid = inner_channel
    assert Cmid % G == 0, "inner_channel must be divisible by the group count"
    apply_conv3 = (inner_channel != out_channels)
    Cfin = out_channels if apply_conv3 else inner_channel
    assert Cfin == Cin, "residual add requires block output channels == in_channels"

    Hp, Wp = H + 2, W + 2
    Lp = Hp * Wp
    f32 = jnp.float32

    # ---- batch-block size: fat blocks, but keep >= 2 grid steps when N >= 2 (v7x megacore)
    rows_live = 9 * Cin + 6 * max(Cin, Cmid, Cfin)       # rough live (C, L)-row count per step
    budget = 6 * 2 ** 20                                 # f32 value bytes per step
    nb_cap = max(1, budget // (4 * Lp * rows_live))
    Nb = int(min(nb_cap, N))
    if N >= 2:
        Nb = int(min(Nb, -(-N // 2)))                    # ceil(N/2): at least two grid steps
    Nb = max(Nb, 1)
    NB = -(-N // Nb)                                     # grid steps (N padded up below)
    N_pad = NB * Nb
    L = Nb * Lp
    Ns = max(Nb, 8)                                      # selector columns (>= 8 for clean dots)

    # ---- pack input: zero-pad batch + 1px spatial border, Nb images fused on the lane axis
    x_p = jnp.pad(x_nchw.astype(f32), ((0, N_pad - N), (0, 0), (1, 1), (1, 1)))
    x_b = (x_p.reshape(NB, Nb, Cin, Lp)
              .transpose(0, 2, 1, 3)
              .reshape(NB, Cin, L))

    # ---- weights / norm params in kernel layout
    def taps(w):  # (O, I, 3, 3) -> (O, 9*I); columns tap-major, in-channel-minor
        o, i = w.shape[0], w.shape[1]
        return jnp.transpose(w, (0, 2, 3, 1)).reshape(o, 9 * i).astype(f32)

    w1_t = taps(params['w1'])                                      # (Cin, 9*Cin)
    w2_t = taps(params['w2'])                                      # (Cmid, 9*Cin)
    if apply_conv3:
        w3_t = params['w3'][:, :, 0, 0].astype(f32)                # (Cfin, Cmid)
        b3_t = params['b3'].reshape(Cfin, 1).astype(f32)
    else:
        w3_t = jnp.zeros((Cfin, Cmid), f32)
        b3_t = jnp.zeros((Cfin, 1), f32)
    g1 = params['g1'].reshape(Cin, 1).astype(f32)
    b1 = params['b1'].reshape(Cin, 1).astype(f32)
    g2 = params['g2'].reshape(Cmid, 1).astype(f32)
    b2 = params['b2'].reshape(Cmid, 1).astype(f32)

    # ---- interior/image selector (L, Ns), its transpose, and same-group indicator matrices
    hh = jnp.arange(Hp)
    ww = jnp.arange(Wp)
    inter2d = ((hh >= 1) & (hh <= H))[:, None] & ((ww >= 1) & (ww <= W))[None, :]  # (Hp, Wp)
    inter_l = jnp.tile(inter2d.reshape(-1), Nb)                                    # (L,) bool
    img = jnp.arange(L) // Lp
    sel = ((img[:, None] == jnp.arange(Ns)[None, :]) & inter_l[:, None]).astype(f32)  # (L, Ns)
    bcast = jnp.transpose(sel)                                                      # (Ns, L)

    def group_mat(C):
        g = jnp.arange(C) // (C // G)
        return (g[:, None] == g[None, :]).astype(f32)                               # (C, C)

    grp1 = group_mat(Cin)
    grp2 = group_mat(Cmid)

    kernel = _make_kernel(Nb, Ns, H, W, Cin, Cmid, Cfin, apply_conv3, Cin // G, Cmid // G)

    const = lambda b: (0, 0)
    out_b = pl.pallas_call(
        kernel,
        out_shape=jax.ShapeDtypeStruct((NB, Cfin, L), f32),
        grid_spec=pltpu.PrefetchScalarGridSpec(
            num_scalar_prefetch=0,
            grid=(NB,),
            in_specs=[
                pl.BlockSpec((None, Cin, L), lambda b: (b, 0, 0)),   # x blocks
                pl.BlockSpec((Cin, 9 * Cin), const),                 # w1 (taps)
                pl.BlockSpec((Cin, 1), const),                       # gamma1
                pl.BlockSpec((Cin, 1), const),                       # beta1
                pl.BlockSpec((Cmid, 9 * Cin), const),                # w2 (taps)
                pl.BlockSpec((Cmid, 1), const),                      # gamma2
                pl.BlockSpec((Cmid, 1), const),                      # beta2
                pl.BlockSpec((Cfin, Cmid), const),                   # w3 (1x1)
                pl.BlockSpec((Cfin, 1), const),                      # b3
                pl.BlockSpec((L, Ns), const),                        # interior/image selector
                pl.BlockSpec((Ns, L), const),                        # its transpose
                pl.BlockSpec((Cin, Cin), const),                     # same-group matrix (gn1)
                pl.BlockSpec((Cmid, Cmid), const),                   # same-group matrix (gn2)
            ],
            out_specs=pl.BlockSpec((None, Cfin, L), lambda b: (b, 0, 0)),
        ),
        compiler_params=pltpu.CompilerParams(
            dimension_semantics=("parallel",),
            vmem_limit_bytes=32 * 2 ** 20,
        ),
    )(x_b, w1_t, g1, b1, w2_t, g2, b2, w3_t, b3_t, sel, bcast, grp1, grp2)

    # ---- unpack: (NB, Cfin, Nb*Lp) -> NCHW interior
    out = (out_b.reshape(NB, Cfin, Nb, Lp)
                .transpose(0, 2, 1, 3)
                .reshape(N_pad, Cfin, Hp, Wp))
    return out[:N, :, 1:H + 1, 1:W + 1]


# ---- pure-JAX reference (NCHW, same semantics as the PyTorch module) ----
def ref_forward(x, p, in_channels, inner_channel, out_channels):
    G1 = in_channels // 8
    G2 = in_channels // 8

    def conv(x, w, pad):
        return jax.lax.conv_general_dilated(
            x, w, (1, 1), pad, dimension_numbers=('NCHW', 'OIHW', 'NCHW'))

    def gn(x, G, gamma, beta):
        N, C, H, W = x.shape
        xg = x.reshape(N, G, C // G, H, W)
        mean = xg.mean(axis=(2, 3, 4), keepdims=True)
        var = xg.var(axis=(2, 3, 4), keepdims=True)
        xn = ((xg - mean) / jnp.sqrt(var + _EPS)).reshape(N, C, H, W)
        return xn * gamma.reshape(1, C, 1, 1) + beta.reshape(1, C, 1, 1)

    out = conv(x, p['w1'], ((1, 1), (1, 1)))
    out = gn(out, G1, p['g1'], p['b1'])
    out = jnp.maximum(out, 0.0)
    out = conv(out, p['w2'], ((1, 1), (1, 1)))
    out = gn(out, G2, p['g2'], p['b2'])
    if inner_channel != out_channels:
        out = conv(out, p['w3'], 'VALID') + p['b3'].reshape(1, -1, 1, 1)
    return out + x


if __name__ == "__main__":
    # small shapes consistent with the module (12x12 spatial, channels divisible by 8)
    N, Cin, H, W = 2, 8, 12, 12
    inner_channel, out_channels = 16, 8

    key = jax.random.PRNGKey(0)
    ks = jax.random.split(key, 8)
    x = jax.random.normal(ks[0], (N, Cin, H, W), jnp.float32)

    params = dict(
        w1=0.1 * jax.random.normal(ks[1], (Cin, Cin, 3, 3), jnp.float32),
        g1=1.0 + 0.05 * jax.random.normal(ks[2], (Cin,), jnp.float32),
        b1=0.05 * jax.random.normal(ks[3], (Cin,), jnp.float32),
        w2=0.1 * jax.random.normal(ks[4], (inner_channel, Cin, 3, 3), jnp.float32),
        g2=1.0 + 0.05 * jax.random.normal(ks[5], (inner_channel,), jnp.float32),
        b2=0.05 * jax.random.normal(ks[6], (inner_channel,), jnp.float32),
        w3=0.1 * jax.random.normal(ks[7], (out_channels, inner_channel, 1, 1), jnp.float32),
        b3=jnp.linspace(-0.1, 0.1, out_channels).astype(jnp.float32),
    )

    out = basic_block_forward(x, params, Cin, inner_channel, out_channels)
    out = jax.block_until_ready(out)

    ref = ref_forward(x, params, Cin, inner_channel, out_channels)
    assert out.shape == ref.shape == (N, Cin, H, W)
    assert jnp.allclose(out, ref, atol=2e-4, rtol=2e-4), "kernel does not match reference"
    print("KERNEL_OK")
</pallas_src>

<mosaic_0001>
module attributes {stable_mosaic.version = 11 : i64} {
  func.func @kernel(%arg0: i32, %arg1: memref<1x8x196xf32, #tpu.memory_space<vmem>>, %arg2: memref<8x72xf32, #tpu.memory_space<vmem>>, %arg3: memref<8x1xf32, #tpu.memory_space<vmem>>, %arg4: memref<8x1xf32, #tpu.memory_space<vmem>>, %arg5: memref<16x72xf32, #tpu.memory_space<vmem>>, %arg6: memref<16x1xf32, #tpu.memory_space<vmem>>, %arg7: memref<16x1xf32, #tpu.memory_space<vmem>>, %arg8: memref<8x16xf32, #tpu.memory_space<vmem>>, %arg9: memref<8x1xf32, #tpu.memory_space<vmem>>, %arg10: memref<196x8xf32, #tpu.memory_space<vmem>>, %arg11: memref<8x196xf32, #tpu.memory_space<vmem>>, %arg12: memref<8x8xf32, #tpu.memory_space<vmem>>, %arg13: memref<16x16xf32, #tpu.memory_space<vmem>>, %arg14: memref<1x8x196xf32, #tpu.memory_space<vmem>>) attributes {dimension_semantics = [#tpu.dimension_semantics<parallel>], iteration_bounds = array<i64: 2>, scalar_prefetch = 0 : i64, scratch_operands = 0 : i64, tpu.core_type = #tpu.core_type<tc>, window_params = [{transform_indices = @transform_0, window_bounds = array<i64: 1, 8, 196>}, {pipeline_mode = #tpu.pipeline_mode<synchronous>, transform_indices = @transform_1, window_bounds = array<i64: 8, 72>}, {pipeline_mode = #tpu.pipeline_mode<synchronous>, transform_indices = @transform_2, window_bounds = array<i64: 8, 1>}, {pipeline_mode = #tpu.pipeline_mode<synchronous>, transform_indices = @transform_3, window_bounds = array<i64: 8, 1>}, {pipeline_mode = #tpu.pipeline_mode<synchronous>, transform_indices = @transform_4, window_bounds = array<i64: 16, 72>}, {pipeline_mode = #tpu.pipeline_mode<synchronous>, transform_indices = @transform_5, window_bounds = array<i64: 16, 1>}, {pipeline_mode = #tpu.pipeline_mode<synchronous>, transform_indices = @transform_6, window_bounds = array<i64: 16, 1>}, {pipeline_mode = #tpu.pipeline_mode<synchronous>, transform_indices = @transform_7, window_bounds = array<i64: 8, 16>}, {pipeline_mode = #tpu.pipeline_mode<synchronous>, transform_indices = @transform_8, window_bounds = array<i64: 8, 1>}, {pipeline_mode = #tpu.pipeline_mode<synchronous>, transform_indices = @transform_9, window_bounds = array<i64: 196, 8>}, {pipeline_mode = #tpu.pipeline_mode<synchronous>, transform_indices = @transform_10, window_bounds = array<i64: 8, 196>}, {pipeline_mode = #tpu.pipeline_mode<synchronous>, transform_indices = @transform_11, window_bounds = array<i64: 8, 8>}, {pipeline_mode = #tpu.pipeline_mode<synchronous>, transform_indices = @transform_12, window_bounds = array<i64: 16, 16>}, {transform_indices = @transform_13, window_bounds = array<i64: 1, 8, 196>}]} {
    %c0 = arith.constant 0 : index
    %c0_0 = arith.constant 0 : index
    %0 = vector.load %arg10[%c0, %c0_0] : memref<196x8xf32, #tpu.memory_space<vmem>>, vector<196x8xf32>
    %c0_1 = arith.constant 0 : index
    %c0_2 = arith.constant 0 : index
    %1 = vector.load %arg11[%c0_1, %c0_2] : memref<8x196xf32, #tpu.memory_space<vmem>>, vector<8x196xf32>
    %cst = arith.constant dense<0.000000e+00> : vector<196xf32>
    %2 = vector.multi_reduction <add>, %1, %cst [0] : vector<8x196xf32> to vector<196xf32>
    %3 = vector.shape_cast %2 : vector<196xf32> to vector<1x196xf32>
    %c0_3 = arith.constant 0 : index
    %c0_4 = arith.constant 0 : index
    %c0_5 = arith.constant 0 : index
    %4 = vector.load %arg1[%c0_3, %c0_4, %c0_5] : memref<1x8x196xf32, #tpu.memory_space<vmem>>, vector<1x8x196xf32>
    %5 = vector.shape_cast %4 : vector<1x8x196xf32> to vector<8x196xf32>
    %cst_6 = arith.constant 0.000000e+00 : f32
    %6 = vector.broadcast %cst_6 : f32 to vector<8x15xf32>
    %7 = tpu.concatenate %6, %5, %6 in 1 : vector<8x15xf32>, vector<8x196xf32>, vector<8x15xf32> -> vector<8x226xf32>
    %8 = vector.extract_strided_slice %7 {offsets = [0, 0], sizes = [8, 196], strides = [1, 1]} : vector<8x226xf32> to vector<8x196xf32>
    %9 = vector.extract_strided_slice %7 {offsets = [0, 1], sizes = [8, 196], strides = [1, 1]} : vector<8x226xf32> to vector<8x196xf32>
    %10 = vector.extract_strided_slice %7 {offsets = [0, 2], sizes = [8, 196], strides = [1, 1]} : vector<8x226xf32> to vector<8x196xf32>
    %11 = vector.extract_strided_slice %7 {offsets = [0, 14], sizes = [8, 196], strides = [1, 1]} : vector<8x226xf32> to vector<8x196xf32>
    %12 = vector.extract_strided_slice %7 {offsets = [0, 15], sizes = [8, 196], strides = [1, 1]} : vector<8x226xf32> to vector<8x196xf32>
    %13 = vector.extract_strided_slice %7 {offsets = [0, 16], sizes = [8, 196], strides = [1, 1]} : vector<8x226xf32> to vector<8x196xf32>
    %14 = vector.extract_strided_slice %7 {offsets = [0, 28], sizes = [8, 196], strides = [1, 1]} : vector<8x226xf32> to vector<8x196xf32>
    %15 = vector.extract_strided_slice %7 {offsets = [0, 29], sizes = [8, 196], strides = [1, 1]} : vector<8x226xf32> to vector<8x196xf32>
    %16 = vector.extract_strided_slice %7 {offsets = [0, 30], sizes = [8, 196], strides = [1, 1]} : vector<8x226xf32> to vector<8x196xf32>
    %17 = tpu.concatenate %8, %9, %10, %11, %12, %13, %14, %15, %16 in 0 : vector<8x196xf32>, vector<8x196xf32>, vector<8x196xf32>, vector<8x196xf32>, vector<8x196xf32>, vector<8x196xf32>, vector<8x196xf32>, vector<8x196xf32>, vector<8x196xf32> -> vector<72x196xf32>
    %c0_7 = arith.constant 0 : index
    %c0_8 = arith.constant 0 : index
    %18 = vector.load %arg2[%c0_7, %c0_8] : memref<8x72xf32, #tpu.memory_space<vmem>>, vector<8x72xf32>
    %cst_9 = arith.constant dense<0.000000e+00> : vector<8x196xf32>
    %19 = tpu.matmul %18, %17, %cst_9 {dimension_numbers = #tpu.dot_dimension_numbers<[1], [0], [0], [1], [0, 0, 1, 1], [], []>} : vector<8x72xf32>, vector<72x196xf32>, vector<8x196xf32> -> vector<8x196xf32>
    %c0_10 = arith.constant 0 : index
    %c0_11 = arith.constant 0 : index
    %20 = vector.load %arg12[%c0_10, %c0_11] : memref<8x8xf32, #tpu.memory_space<vmem>>, vector<8x8xf32>
    %c0_12 = arith.constant 0 : index
    %c0_13 = arith.constant 0 : index
    %21 = vector.load %arg3[%c0_12, %c0_13] : memref<8x1xf32, #tpu.memory_space<vmem>>, vector<8x1xf32>
    %c0_14 = arith.constant 0 : index
    %c0_15 = arith.constant 0 : index
    %22 = vector.load %arg4[%c0_14, %c0_15] : memref<8x1xf32, #tpu.memory_space<vmem>>, vector<8x1xf32>
    %cst_16 = arith.constant dense<0.000000e+00> : vector<8x8xf32>
    %23 = tpu.matmul %19, %0, %cst_16 {dimension_numbers = #tpu.dot_dimension_numbers<[1], [0], [0], [1], [0, 0, 1, 1], [], []>} : vector<8x196xf32>, vector<196x8xf32>, vector<8x8xf32> -> vector<8x8xf32>
    %cst_17 = arith.constant dense<0.000000e+00> : vector<8x8xf32>
    %24 = tpu.matmul %20, %23, %cst_17 {dimension_numbers = #tpu.dot_dimension_numbers<[1], [0], [0], [1], [0, 0, 1, 1], [], []>} : vector<8x8xf32>, vector<8x8xf32>, vector<8x8xf32> -> vector<8x8xf32>
    %cst_18 = arith.constant 8.68055562E-4 : f32
    %25 = vector.broadcast %cst_18 : f32 to vector<8x8xf32>
    %26 = arith.mulf %24, %25 : vector<8x8xf32>
    %27 = vector.extract_strided_slice %26 {offsets = [0, 0], sizes = [8, 1], strides = [1, 1]} : vector<8x8xf32> to vector<8x1xf32>
    %28 = vector.extract_strided_slice %1 {offsets = [0, 0], sizes = [1, 196], strides = [1, 1]} : vector<8x196xf32> to vector<1x196xf32>
    %29 = vector.broadcast %27 : vector<8x1xf32> to vector<8x196xf32>
    %30 = vector.broadcast %28 : vector<1x196xf32> to vector<8x196xf32>
    %31 = arith.mulf %29, %30 : vector<8x196xf32>
    %32 = vector.extract_strided_slice %26 {offsets = [0, 1], sizes = [8, 1], strides = [1, 1]} : vector<8x8xf32> to vector<8x1xf32>
    %33 = vector.extract_strided_slice %1 {offsets = [1, 0], sizes = [1, 196], strides = [1, 1]} : vector<8x196xf32> to vector<1x196xf32>
    %34 = vector.broadcast %32 : vector<8x1xf32> to vector<8x196xf32>
    %35 = vector.broadcast %33 : vector<1x196xf32> to vector<8x196xf32>
    %36 = arith.mulf %34, %35 : vector<8x196xf32>
    %37 = arith.addf %31, %36 : vector<8x196xf32>
    %38 = vector.extract_strided_slice %26 {offsets = [0, 2], sizes = [8, 1], strides = [1, 1]} : vector<8x8xf32> to vector<8x1xf32>
    %39 = vector.extract_strided_slice %1 {offsets = [2, 0], sizes = [1, 196], strides = [1, 1]} : vector<8x196xf32> to vector<1x196xf32>
    %40 = vector.broadcast %38 : vector<8x1xf32> to vector<8x196xf32>
    %41 = vector.broadcast %39 : vector<1x196xf32> to vector<8x196xf32>
    %42 = arith.mulf %40, %41 : vector<8x196xf32>
    %43 = arith.addf %37, %42 : vector<8x196xf32>
    %44 = vector.extract_strided_slice %26 {offsets = [0, 3], sizes = [8, 1], strides = [1, 1]} : vector<8x8xf32> to vector<8x1xf32>
    %45 = vector.extract_strided_slice %1 {offsets = [3, 0], sizes = [1, 196], strides = [1, 1]} : vector<8x196xf32> to vector<1x196xf32>
    %46 = vector.broadcast %44 : vector<8x1xf32> to vector<8x196xf32>
    %47 = vector.broadcast %45 : vector<1x196xf32> to vector<8x196xf32>
    %48 = arith.mulf %46, %47 : vector<8x196xf32>
    %49 = arith.addf %43, %48 : vector<8x196xf32>
    %50 = vector.extract_strided_slice %26 {offsets = [0, 4], sizes = [8, 1], strides = [1, 1]} : vector<8x8xf32> to vector<8x1xf32>
    %51 = vector.extract_strided_slice %1 {offsets = [4, 0], sizes = [1, 196], strides = [1, 1]} : vector<8x196xf32> to vector<1x196xf32>
    %52 = vector.broadcast %50 : vector<8x1xf32> to vector<8x196xf32>
    %53 = vector.broadcast %51 : vector<1x196xf32> to vector<8x196xf32>
    %54 = arith.mulf %52, %53 : vector<8x196xf32>
    %55 = arith.addf %49, %54 : vector<8x196xf32>
    %56 = vector.extract_strided_slice %26 {offsets = [0, 5], sizes = [8, 1], strides = [1, 1]} : vector<8x8xf32> to vector<8x1xf32>
    %57 = vector.extract_strided_slice %1 {offsets = [5, 0], sizes = [1, 196], strides = [1, 1]} : vector<8x196xf32> to vector<1x196xf32>
    %58 = vector.broadcast %56 : vector<8x1xf32> to vector<8x196xf32>
    %59 = vector.broadcast %57 : vector<1x196xf32> to vector<8x196xf32>
    %60 = arith.mulf %58, %59 : vector<8x196xf32>
    %61 = arith.addf %55, %60 : vector<8x196xf32>
    %62 = vector.extract_strided_slice %26 {offsets = [0, 6], sizes = [8, 1], strides = [1, 1]} : vector<8x8xf32> to vector<8x1xf32>
    %63 = vector.extract_strided_slice %1 {offsets = [6, 0], sizes = [1, 196], strides = [1, 1]} : vector<8x196xf32> to vector<1x196xf32>
    %64 = vector.broadcast %62 : vector<8x1xf32> to vector<8x196xf32>
    %65 = vector.broadcast %63 : vector<1x196xf32> to vector<8x196xf32>
    %66 = arith.mulf %64, %65 : vector<8x196xf32>
    %67 = arith.addf %61, %66 : vector<8x196xf32>
    %68 = vector.extract_strided_slice %26 {offsets = [0, 7], sizes = [8, 1], strides = [1, 1]} : vector<8x8xf32> to vector<8x1xf32>
    %69 = vector.extract_strided_slice %1 {offsets = [7, 0], sizes = [1, 196], strides = [1, 1]} : vector<8x196xf32> to vector<1x196xf32>
    %70 = vector.broadcast %68 : vector<8x1xf32> to vector<8x196xf32>
    %71 = vector.broadcast %69 : vector<1x196xf32> to vector<8x196xf32>
    %72 = arith.mulf %70, %71 : vector<8x196xf32>
    %73 = arith.addf %67, %72 : vector<8x196xf32>
    %74 = arith.subf %19, %73 : vector<8x196xf32>
    %75 = arith.mulf %74, %74 : vector<8x196xf32>
    %cst_19 = arith.constant dense<0.000000e+00> : vector<8x8xf32>
    %76 = tpu.matmul %75, %0, %cst_19 {dimension_numbers = #tpu.dot_dimension_numbers<[1], [0], [0], [1], [0, 0, 1, 1], [], []>} : vector<8x196xf32>, vector<196x8xf32>, vector<8x8xf32> -> vector<8x8xf32>
    %cst_20 = arith.constant dense<0.000000e+00> : vector<8x8xf32>
    %77 = tpu.matmul %20, %76, %cst_20 {dimension_numbers = #tpu.dot_dimension_numbers<[1], [0], [0], [1], [0, 0, 1, 1], [], []>} : vector<8x8xf32>, vector<8x8xf32>, vector<8x8xf32> -> vector<8x8xf32>
    %cst_21 = arith.constant 8.68055562E-4 : f32
    %78 = vector.broadcast %cst_21 : f32 to vector<8x8xf32>
    %79 = arith.mulf %77, %78 : vector<8x8xf32>
    %cst_22 = arith.constant 9.99999974E-6 : f32
    %80 = vector.broadcast %cst_22 : f32 to vector<8x8xf32>
    %81 = arith.addf %79, %80 : vector<8x8xf32>
    %82 = math.rsqrt %81 : vector<8x8xf32>
    %83 = vector.extract_strided_slice %82 {offsets = [0, 0], sizes = [8, 1], strides = [1, 1]} : vector<8x8xf32> to vector<8x1xf32>
    %84 = vector.extract_strided_slice %1 {offsets = [0, 0], sizes = [1, 196], strides = [1, 1]} : vector<8x196xf32> to vector<1x196xf32>
    %85 = vector.broadcast %83 : vector<8x1xf32> to vector<8x196xf32>
    %86 = vector.broadcast %84 : vector<1x196xf32> to vector<8x196xf32>
    %87 = arith.mulf %85, %86 : vector<8x196xf32>
    %88 = vector.extract_strided_slice %82 {offsets = [0, 1], sizes = [8, 1], strides = [1, 1]} : vector<8x8xf32> to vector<8x1xf32>
    %89 = vector.extract_strided_slice %1 {offsets = [1, 0], sizes = [1, 196], strides = [1, 1]} : vector<8x196xf32> to vector<1x196xf32>
    %90 = vector.broadcast %88 : vector<8x1xf32> to vector<8x196xf32>
    %91 = vector.broadcast %89 : vector<1x196xf32> to vector<8x196xf32>
    %92 = arith.mulf %90, %91 : vector<8x196xf32>
    %93 = arith.addf %87, %92 : vector<8x196xf32>
    %94 = vector.extract_strided_slice %82 {offsets = [0, 2], sizes = [8, 1], strides = [1, 1]} : vector<8x8xf32> to vector<8x1xf32>
    %95 = vector.extract_strided_slice %1 {offsets = [2, 0], sizes = [1, 196], strides = [1, 1]} : vector<8x196xf32> to vector<1x196xf32>
    %96 = vector.broadcast %94 : vector<8x1xf32> to vector<8x196xf32>
    %97 = vector.broadcast %95 : vector<1x196xf32> to vector<8x196xf32>
    %98 = arith.mulf %96, %97 : vector<8x196xf32>
    %99 = arith.addf %93, %98 : vector<8x196xf32>
    %100 = vector.extract_strided_slice %82 {offsets = [0, 3], sizes = [8, 1], strides = [1, 1]} : vector<8x8xf32> to vector<8x1xf32>
    %101 = vector.extract_strided_slice %1 {offsets = [3, 0], sizes = [1, 196], strides = [1, 1]} : vector<8x196xf32> to vector<1x196xf32>
    %102 = vector.broadcast %100 : vector<8x1xf32> to vector<8x196xf32>
    %103 = vector.broadcast %101 : vector<1x196xf32> to vector<8x196xf32>
    %104 = arith.mulf %102, %103 : vector<8x196xf32>
    %105 = arith.addf %99, %104 : vector<8x196xf32>
    %106 = vector.extract_strided_slice %82 {offsets = [0, 4], sizes = [8, 1], strides = [1, 1]} : vector<8x8xf32> to vector<8x1xf32>
    %107 = vector.extract_strided_slice %1 {offsets = [4, 0], sizes = [1, 196], strides = [1, 1]} : vector<8x196xf32> to vector<1x196xf32>
    %108 = vector.broadcast %106 : vector<8x1xf32> to vector<8x196xf32>
    %109 = vector.broadcast %107 : vector<1x196xf32> to vector<8x196xf32>
    %110 = arith.mulf %108, %109 : vector<8x196xf32>
    %111 = arith.addf %105, %110 : vector<8x196xf32>
    %112 = vector.extract_strided_slice %82 {offsets = [0, 5], sizes = [8, 1], strides = [1, 1]} : vector<8x8xf32> to vector<8x1xf32>
    %113 = vector.extract_strided_slice %1 {offsets = [5, 0], sizes = [1, 196], strides = [1, 1]} : vector<8x196xf32> to vector<1x196xf32>
    %114 = vector.broadcast %112 : vector<8x1xf32> to vector<8x196xf32>
    %115 = vector.broadcast %113 : vector<1x196xf32> to vector<8x196xf32>
    %116 = arith.mulf %114, %115 : vector<8x196xf32>
    %117 = arith.addf %111, %116 : vector<8x196xf32>
    %118 = vector.extract_strided_slice %82 {offsets = [0, 6], sizes = [8, 1], strides = [1, 1]} : vector<8x8xf32> to vector<8x1xf32>
    %119 = vector.extract_strided_slice %1 {offsets = [6, 0], sizes = [1, 196], strides = [1, 1]} : vector<8x196xf32> to vector<1x196xf32>
    %120 = vector.broadcast %118 : vector<8x1xf32> to vector<8x196xf32>
    %121 = vector.broadcast %119 : vector<1x196xf32> to vector<8x196xf32>
    %122 = arith.mulf %120, %121 : vector<8x196xf32>
    %123 = arith.addf %117, %122 : vector<8x196xf32>
    %124 = vector.extract_strided_slice %82 {offsets = [0, 7], sizes = [8, 1], strides = [1, 1]} : vector<8x8xf32> to vector<8x1xf32>
    %125 = vector.extract_strided_slice %1 {offsets = [7, 0], sizes = [1, 196], strides = [1, 1]} : vector<8x196xf32> to vector<1x196xf32>
    %126 = vector.broadcast %124 : vector<8x1xf32> to vector<8x196xf32>
    %127 = vector.broadcast %125 : vector<1x196xf32> to vector<8x196xf32>
    %128 = arith.mulf %126, %127 : vector<8x196xf32>
    %129 = arith.addf %123, %128 : vector<8x196xf32>
    %130 = arith.mulf %74, %129 : vector<8x196xf32>
    %131 = vector.broadcast %21 : vector<8x1xf32> to vector<8x196xf32>
    %132 = arith.mulf %130, %131 : vector<8x196xf32>
    %133 = vector.broadcast %22 : vector<8x1xf32> to vector<8x196xf32>
    %134 = arith.addf %132, %133 : vector<8x196xf32>
    %cst_23 = arith.constant 0.000000e+00 : f32
    %135 = vector.broadcast %cst_23 : f32 to vector<8x196xf32>
    %136 = arith.maximumf %134, %135 : vector<8x196xf32>
    %137 = vector.broadcast %3 : vector<1x196xf32> to vector<8x196xf32>
    %138 = arith.mulf %136, %137 : vector<8x196xf32>
    %cst_24 = arith.constant 0.000000e+00 : f32
    %139 = vector.broadcast %cst_24 : f32 to vector<8x15xf32>
    %140 = tpu.concatenate %139, %138, %139 in 1 : vector<8x15xf32>, vector<8x196xf32>, vector<8x15xf32> -> vector<8x226xf32>
    %141 = vector.extract_strided_slice %140 {offsets = [0, 0], sizes = [8, 196], strides = [1, 1]} : vector<8x226xf32> to vector<8x196xf32>
    %142 = vector.extract_strided_slice %140 {offsets = [0, 1], sizes = [8, 196], strides = [1, 1]} : vector<8x226xf32> to vector<8x196xf32>
    %143 = vector.extract_strided_slice %140 {offsets = [0, 2], sizes = [8, 196], strides = [1, 1]} : vector<8x226xf32> to vector<8x196xf32>
    %144 = vector.extract_strided_slice %140 {offsets = [0, 14], sizes = [8, 196], strides = [1, 1]} : vector<8x226xf32> to vector<8x196xf32>
    %145 = vector.extract_strided_slice %140 {offsets = [0, 15], sizes = [8, 196], strides = [1, 1]} : vector<8x226xf32> to vector<8x196xf32>
    %146 = vector.extract_strided_slice %140 {offsets = [0, 16], sizes = [8, 196], strides = [1, 1]} : vector<8x226xf32> to vector<8x196xf32>
    %147 = vector.extract_strided_slice %140 {offsets = [0, 28], sizes = [8, 196], strides = [1, 1]} : vector<8x226xf32> to vector<8x196xf32>
    %148 = vector.extract_strided_slice %140 {offsets = [0, 29], sizes = [8, 196], strides = [1, 1]} : vector<8x226xf32> to vector<8x196xf32>
    %149 = vector.extract_strided_slice %140 {offsets = [0, 30], sizes = [8, 196], strides = [1, 1]} : vector<8x226xf32> to vector<8x196xf32>
    %150 = tpu.concatenate %141, %142, %143, %144, %145, %146, %147, %148, %149 in 0 : vector<8x196xf32>, vector<8x196xf32>, vector<8x196xf32>, vector<8x196xf32>, vector<8x196xf32>, vector<8x196xf32>, vector<8x196xf32>, vector<8x196xf32>, vector<8x196xf32> -> vector<72x196xf32>
    %c0_25 = arith.constant 0 : index
    %c0_26 = arith.constant 0 : index
    %151 = vector.load %arg5[%c0_25, %c0_26] : memref<16x72xf32, #tpu.memory_space<vmem>>, vector<16x72xf32>
    %cst_27 = arith.constant dense<0.000000e+00> : vector<16x196xf32>
    %152 = tpu.matmul %151, %150, %cst_27 {dimension_numbers = #tpu.dot_dimension_numbers<[1], [0], [0], [1], [0, 0, 1, 1], [], []>} : vector<16x72xf32>, vector<72x196xf32>, vector<16x196xf32> -> vector<16x196xf32>
    %c0_28 = arith.constant 0 : index
    %c0_29 = arith.constant 0 : index
    %153 = vector.load %arg13[%c0_28, %c0_29] : memref<16x16xf32, #tpu.memory_space<vmem>>, vector<16x16xf32>
    %c0_30 = arith.constant 0 : index
    %c0_31 = arith.constant 0 : index
    %154 = vector.load %arg6[%c0_30, %c0_31] : memref<16x1xf32, #tpu.memory_space<vmem>>, vector<16x1xf32>
    %c0_32 = arith.constant 0 : index
    %c0_33 = arith.constant 0 : index
    %155 = vector.load %arg7[%c0_32, %c0_33] : memref<16x1xf32, #tpu.memory_space<vmem>>, vector<16x1xf32>
    %cst_34 = arith.constant dense<0.000000e+00> : vector<16x8xf32>
    %156 = tpu.matmul %152, %0, %cst_34 {dimension_numbers = #tpu.dot_dimension_numbers<[1], [0], [0], [1], [0, 0, 1, 1], [], []>} : vector<16x196xf32>, vector<196x8xf32>, vector<16x8xf32> -> vector<16x8xf32>
    %cst_35 = arith.constant dense<0.000000e+00> : vector<16x8xf32>
    %157 = tpu.matmul %153, %156, %cst_35 {dimension_numbers = #tpu.dot_dimension_numbers<[1], [0], [0], [1], [0, 0, 1, 1], [], []>} : vector<16x16xf32>, vector<16x8xf32>, vector<16x8xf32> -> vector<16x8xf32>
    %cst_36 = arith.constant 4.34027781E-4 : f32
    %158 = vector.broadcast %cst_36 : f32 to vector<16x8xf32>
    %159 = arith.mulf %157, %158 : vector<16x8xf32>
    %160 = vector.extract_strided_slice %159 {offsets = [0, 0], sizes = [16, 1], strides = [1, 1]} : vector<16x8xf32> to vector<16x1xf32>
    %161 = vector.extract_strided_slice %1 {offsets = [0, 0], sizes = [1, 196], strides = [1, 1]} : vector<8x196xf32> to vector<1x196xf32>
    %162 = vector.broadcast %160 : vector<16x1xf32> to vector<16x196xf32>
    %163 = vector.broadcast %161 : vector<1x196xf32> to vector<16x196xf32>
    %164 = arith.mulf %162, %163 : vector<16x196xf32>
    %165 = vector.extract_strided_slice %159 {offsets = [0, 1], sizes = [16, 1], strides = [1, 1]} : vector<16x8xf32> to vector<16x1xf32>
    %166 = vector.extract_strided_slice %1 {offsets = [1, 0], sizes = [1, 196], strides = [1, 1]} : vector<8x196xf32> to vector<1x196xf32>
    %167 = vector.broadcast %165 : vector<16x1xf32> to vector<16x196xf32>
    %168 = vector.broadcast %166 : vector<1x196xf32> to vector<16x196xf32>
    %169 = arith.mulf %167, %168 : vector<16x196xf32>
    %170 = arith.addf %164, %169 : vector<16x196xf32>
    %171 = vector.extract_strided_slice %159 {offsets = [0, 2], sizes = [16, 1], strides = [1, 1]} : vector<16x8xf32> to vector<16x1xf32>
    %172 = vector.extract_strided_slice %1 {offsets = [2, 0], sizes = [1, 196], strides = [1, 1]} : vector<8x196xf32> to vector<1x196xf32>
    %173 = vector.broadcast %171 : vector<16x1xf32> to vector<16x196xf32>
    %174 = vector.broadcast %172 : vector<1x196xf32> to vector<16x196xf32>
    %175 = arith.mulf %173, %174 : vector<16x196xf32>
    %176 = arith.addf %170, %175 : vector<16x196xf32>
    %177 = vector.extract_strided_slice %159 {offsets = [0, 3], sizes = [16, 1], strides = [1, 1]} : vector<16x8xf32> to vector<16x1xf32>
    %178 = vector.extract_strided_slice %1 {offsets = [3, 0], sizes = [1, 196], strides = [1, 1]} : vector<8x196xf32> to vector<1x196xf32>
    %179 = vector.broadcast %177 : vector<16x1xf32> to vector<16x196xf32>
    %180 = vector.broadcast %178 : vector<1x196xf32> to vector<16x196xf32>
    %181 = arith.mulf %179, %180 : vector<16x196xf32>
    %182 = arith.addf %176, %181 : vector<16x196xf32>
    %183 = vector.extract_strided_slice %159 {offsets = [0, 4], sizes = [16, 1], strides = [1, 1]} : vector<16x8xf32> to vector<16x1xf32>
    %184 = vector.extract_strided_slice %1 {offsets = [4, 0], sizes = [1, 196], strides = [1, 1]} : vector<8x196xf32> to vector<1x196xf32>
    %185 = vector.broadcast %183 : vector<16x1xf32> to vector<16x196xf32>
    %186 = vector.broadcast %184 : vector<1x196xf32> to vector<16x196xf32>
    %187 = arith.mulf %185, %186 : vector<16x196xf32>
    %188 = arith.addf %182, %187 : vector<16x196xf32>
    %189 = vector.extract_strided_slice %159 {offsets = [0, 5], sizes = [16, 1], strides = [1, 1]} : vector<16x8xf32> to vector<16x1xf32>
    %190 = vector.extract_strided_slice %1 {offsets = [5, 0], sizes = [1, 196], strides = [1, 1]} : vector<8x196xf32> to vector<1x196xf32>
    %191 = vector.broadcast %189 : vector<16x1xf32> to vector<16x196xf32>
    %192 = vector.broadcast %190 : vector<1x196xf32> to vector<16x196xf32>
    %193 = arith.mulf %191, %192 : vector<16x196xf32>
    %194 = arith.addf %188, %193 : vector<16x196xf32>
    %195 = vector.extract_strided_slice %159 {offsets = [0, 6], sizes = [16, 1], strides = [1, 1]} : vector<16x8xf32> to vector<16x1xf32>
    %196 = vector.extract_strided_slice %1 {offsets = [6, 0], sizes = [1, 196], strides = [1, 1]} : vector<8x196xf32> to vector<1x196xf32>
    %197 = vector.broadcast %195 : vector<16x1xf32> to vector<16x196xf32>
    %198 = vector.broadcast %196 : vector<1x196xf32> to vector<16x196xf32>
    %199 = arith.mulf %197, %198 : vector<16x196xf32>
    %200 = arith.addf %194, %199 : vector<16x196xf32>
    %201 = vector.extract_strided_slice %159 {offsets = [0, 7], sizes = [16, 1], strides = [1, 1]} : vector<16x8xf32> to vector<16x1xf32>
    %202 = vector.extract_strided_slice %1 {offsets = [7, 0], sizes = [1, 196], strides = [1, 1]} : vector<8x196xf32> to vector<1x196xf32>
    %203 = vector.broadcast %201 : vector<16x1xf32> to vector<16x196xf32>
    %204 = vector.broadcast %202 : vector<1x196xf32> to vector<16x196xf32>
    %205 = arith.mulf %203, %204 : vector<16x196xf32>
    %206 = arith.addf %200, %205 : vector<16x196xf32>
    %207 = arith.subf %152, %206 : vector<16x196xf32>
    %208 = arith.mulf %207, %207 : vector<16x196xf32>
    %cst_37 = arith.constant dense<0.000000e+00> : vector<16x8xf32>
    %209 = tpu.matmul %208, %0, %cst_37 {dimension_numbers = #tpu.dot_dimension_numbers<[1], [0], [0], [1], [0, 0, 1, 1], [], []>} : vector<16x196xf32>, vector<196x8xf32>, vector<16x8xf32> -> vector<16x8xf32>
    %cst_38 = arith.constant dense<0.000000e+00> : vector<16x8xf32>
    %210 = tpu.matmul %153, %209, %cst_38 {dimension_numbers = #tpu.dot_dimension_numbers<[1], [0], [0], [1], [0, 0, 1, 1], [], []>} : vector<16x16xf32>, vector<16x8xf32>, vector<16x8xf32> -> vector<16x8xf32>
    %cst_39 = arith.constant 4.34027781E-4 : f32
    %211 = vector.broadcast %cst_39 : f32 to vector<16x8xf32>
    %212 = arith.mulf %210, %211 : vector<16x8xf32>
    %cst_40 = arith.constant 9.99999974E-6 : f32
    %213 = vector.broadcast %cst_40 : f32 to vector<16x8xf32>
    %214 = arith.addf %212, %213 : vector<16x8xf32>
    %215 = math.rsqrt %214 : vector<16x8xf32>
    %216 = vector.extract_strided_slice %215 {offsets = [0, 0], sizes = [16, 1], strides = [1, 1]} : vector<16x8xf32> to vector<16x1xf32>
    %217 = vector.extract_strided_slice %1 {offsets = [0, 0], sizes = [1, 196], strides = [1, 1]} : vector<8x196xf32> to vector<1x196xf32>
    %218 = vector.broadcast %216 : vector<16x1xf32> to vector<16x196xf32>
    %219 = vector.broadcast %217 : vector<1x196xf32> to vector<16x196xf32>
    %220 = arith.mulf %218, %219 : vector<16x196xf32>
    %221 = vector.extract_strided_slice %215 {offsets = [0, 1], sizes = [16, 1], strides = [1, 1]} : vector<16x8xf32> to vector<16x1xf32>
    %222 = vector.extract_strided_slice %1 {offsets = [1, 0], sizes = [1, 196], strides = [1, 1]} : vector<8x196xf32> to vector<1x196xf32>
    %223 = vector.broadcast %221 : vector<16x1xf32> to vector<16x196xf32>
    %224 = vector.broadcast %222 : vector<1x196xf32> to vector<16x196xf32>
    %225 = arith.mulf %223, %224 : vector<16x196xf32>
    %226 = arith.addf %220, %225 : vector<16x196xf32>
    %227 = vector.extract_strided_slice %215 {offsets = [0, 2], sizes = [16, 1], strides = [1, 1]} : vector<16x8xf32> to vector<16x1xf32>
    %228 = vector.extract_strided_slice %1 {offsets = [2, 0], sizes = [1, 196], strides = [1, 1]} : vector<8x196xf32> to vector<1x196xf32>
    %229 = vector.broadcast %227 : vector<16x1xf32> to vector<16x196xf32>
    %230 = vector.broadcast %228 : vector<1x196xf32> to vector<16x196xf32>
    %231 = arith.mulf %229, %230 : vector<16x196xf32>
    %232 = arith.addf %226, %231 : vector<16x196xf32>
    %233 = vector.extract_strided_slice %215 {offsets = [0, 3], sizes = [16, 1], strides = [1, 1]} : vector<16x8xf32> to vector<16x1xf32>
    %234 = vector.extract_strided_slice %1 {offsets = [3, 0], sizes = [1, 196], strides = [1, 1]} : vector<8x196xf32> to vector<1x196xf32>
    %235 = vector.broadcast %233 : vector<16x1xf32> to vector<16x196xf32>
    %236 = vector.broadcast %234 : vector<1x196xf32> to vector<16x196xf32>
    %237 = arith.mulf %235, %236 : vector<16x196xf32>
    %238 = arith.addf %232, %237 : vector<16x196xf32>
    %239 = vector.extract_strided_slice %215 {offsets = [0, 4], sizes = [16, 1], strides = [1, 1]} : vector<16x8xf32> to vector<16x1xf32>
    %240 = vector.extract_strided_slice %1 {offsets = [4, 0], sizes = [1, 196], strides = [1, 1]} : vector<8x196xf32> to vector<1x196xf32>
    %241 = vector.broadcast %239 : vector<16x1xf32> to vector<16x196xf32>
    %242 = vector.broadcast %240 : vector<1x196xf32> to vector<16x196xf32>
    %243 = arith.mulf %241, %242 : vector<16x196xf32>
    %244 = arith.addf %238, %243 : vector<16x196xf32>
    %245 = vector.extract_strided_slice %215 {offsets = [0, 5], sizes = [16, 1], strides = [1, 1]} : vector<16x8xf32> to vector<16x1xf32>
    %246 = vector.extract_strided_slice %1 {offsets = [5, 0], sizes = [1, 196], strides = [1, 1]} : vector<8x196xf32> to vector<1x196xf32>
    %247 = vector.broadcast %245 : vector<16x1xf32> to vector<16x196xf32>
    %248 = vector.broadcast %246 : vector<1x196xf32> to vector<16x196xf32>
    %249 = arith.mulf %247, %248 : vector<16x196xf32>
    %250 = arith.addf %244, %249 : vector<16x196xf32>
    %251 = vector.extract_strided_slice %215 {offsets = [0, 6], sizes = [16, 1], strides = [1, 1]} : vector<16x8xf32> to vector<16x1xf32>
    %252 = vector.extract_strided_slice %1 {offsets = [6, 0], sizes = [1, 196], strides = [1, 1]} : vector<8x196xf32> to vector<1x196xf32>
    %253 = vector.broadcast %251 : vector<16x1xf32> to vector<16x196xf32>
    %254 = vector.broadcast %252 : vector<1x196xf32> to vector<16x196xf32>
    %255 = arith.mulf %253, %254 : vector<16x196xf32>
    %256 = arith.addf %250, %255 : vector<16x196xf32>
    %257 = vector.extract_strided_slice %215 {offsets = [0, 7], sizes = [16, 1], strides = [1, 1]} : vector<16x8xf32> to vector<16x1xf32>
    %258 = vector.extract_strided_slice %1 {offsets = [7, 0], sizes = [1, 196], strides = [1, 1]} : vector<8x196xf32> to vector<1x196xf32>
    %259 = vector.broadcast %257 : vector<16x1xf32> to vector<16x196xf32>
    %260 = vector.broadcast %258 : vector<1x196xf32> to vector<16x196xf32>
    %261 = arith.mulf %259, %260 : vector<16x196xf32>
    %262 = arith.addf %256, %261 : vector<16x196xf32>
    %263 = arith.mulf %207, %262 : vector<16x196xf32>
    %264 = vector.broadcast %154 : vector<16x1xf32> to vector<16x196xf32>
    %265 = arith.mulf %263, %264 : vector<16x196xf32>
    %266 = vector.broadcast %155 : vector<16x1xf32> to vector<16x196xf32>
    %267 = arith.addf %265, %266 : vector<16x196xf32>
    %c0_41 = arith.constant 0 : index
    %c0_42 = arith.constant 0 : index
    %268 = vector.load %arg8[%c0_41, %c0_42] : memref<8x16xf32, #tpu.memory_space<vmem>>, vector<8x16xf32>
    %cst_43 = arith.constant dense<0.000000e+00> : vector<8x196xf32>
    %269 = tpu.matmul %268, %267, %cst_43 {dimension_numbers = #tpu.dot_dimension_numbers<[1], [0], [0], [1], [0, 0, 1, 1], [], []>} : vector<8x16xf32>, vector<16x196xf32>, vector<8x196xf32> -> vector<8x196xf32>
    %c0_44 = arith.constant 0 : index
    %c0_45 = arith.constant 0 : index
    %270 = vector.load %arg9[%c0_44, %c0_45] : memref<8x1xf32, #tpu.memory_space<vmem>>, vector<8x1xf32>
    %271 = vector.broadcast %270 : vector<8x1xf32> to vector<8x196xf32>
    %272 = arith.addf %269, %271 : vector<8x196xf32>
    %c0_46 = arith.constant 0 : index
    %c0_47 = arith.constant 0 : index
    %c0_48 = arith.constant 0 : index
    %273 = vector.load %arg1[%c0_46, %c0_47, %c0_48] : memref<1x8x196xf32, #tpu.memory_space<vmem>>, vector<1x8x196xf32>
    %274 = vector.shape_cast %273 : vector<1x8x196xf32> to vector<8x196xf32>
    %275 = arith.addf %272, %274 : vector<8x196xf32>
    %c0_49 = arith.constant 0 : index
    %c0_50 = arith.constant 0 : index
    %c0_51 = arith.constant 0 : index
    %276 = vector.load %arg14[%c0_49, %c0_50, %c0_51] : memref<1x8x196xf32, #tpu.memory_space<vmem>>, vector<1x8x196xf32>
    %277 = vector.shape_cast %276 : vector<1x8x196xf32> to vector<8x196xf32>
    %278 = vector.shape_cast %275 : vector<8x196xf32> to vector<1x8x196xf32>
    tpu.vector_store %arg14[%c0_49, %c0_50, %c0_51], %278 {strides = array<i32>} : memref<1x8x196xf32, #tpu.memory_space<vmem>>, vector<1x8x196xf32>,
    return
  }
  func.func @transform_0(%arg0: i32) -> (i32, i32, i32) {
    %c0_i32 = arith.constant 0 : i32
    %c0_i32_0 = arith.constant 0 : i32
    %c0_i32_1 = arith.constant 0 : i32
    return %arg0, %c0_i32, %c0_i32_0 : i32, i32, i32
  }
  func.func @transform_1(%arg0: i32) -> (i32, i32) {
    %c0_i32 = arith.constant 0 : i32
    %c0_i32_0 = arith.constant 0 : i32
    %c0_i32_1 = arith.constant 0 : i32
    return %c0_i32, %c0_i32_0 : i32, i32
  }
  func.func @transform_2(%arg0: i32) -> (i32, i32) {
    %c0_i32 = arith.constant 0 : i32
    %c0_i32_0 = arith.constant 0 : i32
    %c0_i32_1 = arith.constant 0 : i32
    return %c0_i32, %c0_i32_0 : i32, i32
  }
  func.func @transform_3(%arg0: i32) -> (i32, i32) {
    %c0_i32 = arith.constant 0 : i32
    %c0_i32_0 = arith.constant 0 : i32
    %c0_i32_1 = arith.constant 0 : i32
    return %c0_i32, %c0_i32_0 : i32, i32
  }
  func.func @transform_4(%arg0: i32) -> (i32, i32) {
    %c0_i32 = arith.constant 0 : i32
    %c0_i32_0 = arith.constant 0 : i32
    %c0_i32_1 = arith.constant 0 : i32
    return %c0_i32, %c0_i32_0 : i32, i32
  }
  func.func @transform_5(%arg0: i32) -> (i32, i32) {
    %c0_i32 = arith.constant 0 : i32
    %c0_i32_0 = arith.constant 0 : i32
    %c0_i32_1 = arith.constant 0 : i32
    return %c0_i32, %c0_i32_0 : i32, i32
  }
  func.func @transform_6(%arg0: i32) -> (i32, i32) {
    %c0_i32 = arith.constant 0 : i32
    %c0_i32_0 = arith.constant 0 : i32
    %c0_i32_1 = arith.constant 0 : i32
    return %c0_i32, %c0_i32_0 : i32, i32
  }
  func.func @transform_7(%arg0: i32) -> (i32, i32) {
    %c0_i32 = arith.constant 0 : i32
    %c0_i32_0 = arith.constant 0 : i32
    %c0_i32_1 = arith.constant 0 : i32
    return %c0_i32, %c0_i32_0 : i32, i32
  }
  func.func @transform_8(%arg0: i32) -> (i32, i32) {
    %c0_i32 = arith.constant 0 : i32
    %c0_i32_0 = arith.constant 0 : i32
    %c0_i32_1 = arith.constant 0 : i32
    return %c0_i32, %c0_i32_0 : i32, i32
  }
  func.func @transform_9(%arg0: i32) -> (i32, i32) {
    %c0_i32 = arith.constant 0 : i32
    %c0_i32_0 = arith.constant 0 : i32
    %c0_i32_1 = arith.constant 0 : i32
    return %c0_i32, %c0_i32_0 : i32, i32
  }
  func.func @transform_10(%arg0: i32) -> (i32, i32) {
    %c0_i32 = arith.constant 0 : i32
    %c0_i32_0 = arith.constant 0 : i32
    %c0_i32_1 = arith.constant 0 : i32
    return %c0_i32, %c0_i32_0 : i32, i32
  }
  func.func @transform_11(%arg0: i32) -> (i32, i32) {
    %c0_i32 = arith.constant 0 : i32
    %c0_i32_0 = arith.constant 0 : i32
    %c0_i32_1 = arith.constant 0 : i32
    return %c0_i32, %c0_i32_0 : i32, i32
  }
  func.func @transform_12(%arg0: i32) -> (i32, i32) {
    %c0_i32 = arith.constant 0 : i32
    %c0_i32_0 = arith.constant 0 : i32
    %c0_i32_1 = arith.constant 0 : i32
    return %c0_i32, %c0_i32_0 : i32, i32
  }
  func.func @transform_13(%arg0: i32) -> (i32, i32, i32) {
    %c0_i32 = arith.constant 0 : i32
    %c0_i32_0 = arith.constant 0 : i32
    %c0_i32_1 = arith.constant 0 : i32
    return %arg0, %c0_i32, %c0_i32_0 : i32, i32, i32
  }
}

</mosaic_0001>

<llo_original>
// kernel: tpu_custom_call.1
$region0: #{tpu_custom_call.1}
  #allocation0 [shape = 'u32[]', space=smem, size = 0x4, offset = 0x4, fixed_abs, tag = 'smem constant byte address 0x4 - core index']
  #allocation1 [shape = 'u32[144,128]{1,0:T(1,128)}', space=vmem, size = 0x12000, scoped, tag = 'internal scratch']
  %s0 = inlined_call_operand.vmem [shape: f32[2,8,196], index: 0, kind: input, shape index: {}]
  %s1 = inlined_call_operand.vmem [shape: f32[8,72], index: 1, kind: input, shape index: {}]
  %s2 = inlined_call_operand.vmem [shape: f32[8,1], index: 2, kind: input, shape index: {}]
  %s3 = inlined_call_operand.vmem [shape: f32[8,1], index: 3, kind: input, shape index: {}]
  %s4 = inlined_call_operand.vmem [shape: f32[16,72], index: 4, kind: input, shape index: {}]
  %s5 = inlined_call_operand.vmem [shape: f32[16,1], index: 5, kind: input, shape index: {}]
  %s6 = inlined_call_operand.vmem [shape: f32[16,1], index: 6, kind: input, shape index: {}]
  %s7 = inlined_call_operand.vmem [shape: f32[8,16], index: 7, kind: input, shape index: {}]
  %s8 = inlined_call_operand.vmem [shape: f32[8,1], index: 8, kind: input, shape index: {}]
  %s9 = inlined_call_operand.vmem [shape: f32[196,8], index: 9, kind: input, shape index: {}]
  %s10 = inlined_call_operand.vmem [shape: f32[8,196], index: 10, kind: input, shape index: {}]
  %s11 = inlined_call_operand.vmem [shape: f32[8,8], index: 11, kind: input, shape index: {}]
  %s12 = inlined_call_operand.vmem [shape: f32[16,16], index: 12, kind: input, shape index: {}]
  %s13 = inlined_call_operand.hbm [shape: f32[2,8,196], index: 13, kind: output, shape index: {}]
  %s14 = sld [smem:[#allocation0]]
  $region85: #{tpu_custom_call.1} parent=0
    _
  %s16 = ssub.s32 1, %s14
  %s17 = scalar_select 0, %s16, %s14
  $region1: #{tpu_custom_call.1} parent=0
    #allocation2 [shape = 'u8[16384]{0}', space=vmem, size = 0x4000, scoped, tag = 'output window, operand 0']
    #allocation3 [shape = 's32[2]{0}', space=sflag, size = 0x8, scoped, tag = 'scoped memory for tpu_custom_call.1']
    %18 = vsyncpa [#allocation3], 0
    %s19 = scalar_lea.sflag [#allocation3], 1
    %20 = vsyncpa %s19, 0
    loop: start=0, step=1, limit=4
    $region2: #{tpu_custom_call.1} parent=1 // loop_pre_header
      _
    $region3: #{tpu_custom_call.1} parent=1 // loop_header
      %s22 = sphi 0, %s26
      %p23 = scmp.ge.s32.totalorder %s22, 4
      %s32 = sphi 0, %s34
      %s35 = sphi 0, %s32
      %s36 = sphi 0, %s35
      %s52 = sphi 0, %s36
      %s56 = sphi 0, %s56
      %s58 = sphi 0, %s56
      %s59 = sphi 0, %s58
      %s73 = sphi 0, %s59
      %s77 = sphi 0, %s77
      %s79 = sphi 0, %s77
      %s80 = sphi 0, %s79
      %s94 = sphi 0, %s80
      %s98 = sphi 0, %s98
      %s100 = sphi 0, %s98
      %s101 = sphi 0, %s100
      %s115 = sphi 0, %s101
      %s119 = sphi 0, %s119
      %s121 = sphi 0, %s119
      %s122 = sphi 0, %s121
      %s136 = sphi 0, %s122
      %s140 = sphi 0, %s140
      %s142 = sphi 0, %s140
      %s143 = sphi 0, %s142
      %s157 = sphi 0, %s143
      %s161 = sphi 0, %s161
      %s163 = sphi 0, %s161
      %s164 = sphi 0, %s163
      %s178 = sphi 0, %s164
      %s182 = sphi 0, %s182
      %s184 = sphi 0, %s182
      %s185 = sphi 0, %s184
      %s199 = sphi 0, %s185
      %s203 = sphi 0, %s203
      %s205 = sphi 0, %s203
      %s206 = sphi 0, %s205
      %s220 = sphi 0, %s206
      %s224 = sphi 0, %s224
      %s226 = sphi 0, %s224
      %s227 = sphi 0, %s226
      %s241 = sphi 0, %s227
      %s245 = sphi 0, %s245
      %s247 = sphi 0, %s245
      %s248 = sphi 0, %s247
      %s262 = sphi 0, %s248
      %s266 = sphi 0, %s266
      %s268 = sphi 0, %s266
      %s269 = sphi 0, %s268
      %s283 = sphi 0, %s269
      %s287 = sphi 0, %s287
      %s289 = sphi 0, %s287
      %s290 = sphi 0, %s289
      %s304 = sphi 0, %s290
      %s310 = sphi 0, %s312
      %s313 = sphi 0, %s310
      %s314 = sphi 0, %s313
      %s330 = sphi 0, %s314
    $region4: #{tpu_custom_call.1} parent=1 // loop_header_branch
      %25 = sbr.rel (%p23) target = $region8
    $region5: #{tpu_custom_call.1} parent=1 // loop_body
      %s27 = ssub.s32 %s22, 1
      %s28 = ssub.s32 %s22, 2
      %s29 = sadd.s32 %s22, 1
      %s30 = ssub.s32 %s22, %s29
      %p31 = scmp.eq.s32.totalorder %s30, 0
      %s33 = sadd.s32 %s32, 1
      %s34 = scalar_select %p31, %s32, %s33
      %p37 = pneg %p31
      %p38 = scmp.eq.s32.totalorder %s22, 1
      %p39 = por %p37, %p38
      %p40 = scmp.ne.s32.totalorder %s32, %s35
      %p41 = scmp.eq.s32.totalorder %s22, 0
      %p42 = por %p40, %p41
      %p43 = scmp.ne.s32.totalorder %s32, %s35
      %p44 = scmp.eq.s32.totalorder %s27, 1
      %p45 = por %p43, %p44
      %p46 = scmp.ne.s32.totalorder %s35, %s36
      %p47 = scmp.eq.s32.totalorder %s27, 0
      %p48 = por %p46, %p47
      %p49 = scmp.ne.s32.totalorder %s35, %s36
      %p50 = scmp.eq.s32.totalorder %s28, 1
      %p51 = por %p49, %p50
      %p53 = scmp.ne.s32.totalorder %s36, %s52
      %p54 = scmp.eq.s32.totalorder %s28, 0
      %p55 = por %p53, %p54
      %s57 = sadd.s32 %s56, 1
      %p60 = scmp.eq.s32.totalorder %s22, 1
      %p61 = scmp.ne.s32.totalorder %s56, %s58
      %p62 = scmp.eq.s32.totalorder %s22, 0
      %p63 = por %p61, %p62
      %p64 = scmp.ne.s32.totalorder %s56, %s58
      %p65 = scmp.eq.s32.totalorder %s27, 1
      %p66 = por %p64, %p65
      %p67 = scmp.ne.s32.totalorder %s58, %s59
      %p68 = scmp.eq.s32.totalorder %s27, 0
      %p69 = por %p67, %p68
      %p70 = scmp.ne.s32.totalorder %s58, %s59
      %p71 = scmp.eq.s32.totalorder %s28, 1
      %p72 = por %p70, %p71
      %p74 = scmp.ne.s32.totalorder %s59, %s73
      %p75 = scmp.eq.s32.totalorder %s28, 0
      %p76 = por %p74, %p75
      %s78 = sadd.s32 %s77, 1
      %p81 = scmp.eq.s32.totalorder %s22, 1
      %p82 = scmp.ne.s32.totalorder %s77, %s79
      %p83 = scmp.eq.s32.totalorder %s22, 0
      %p84 = por %p82, %p83
      %p85 = scmp.ne.s32.totalorder %s77, %s79
      %p86 = scmp.eq.s32.totalorder %s27, 1
      %p87 = por %p85, %p86
      %p88 = scmp.ne.s32.totalorder %s79, %s80
      %p89 = scmp.eq.s32.totalorder %s27, 0
      %p90 = por %p88, %p89
      %p91 = scmp.ne.s32.totalorder %s79, %s80
      %p92 = scmp.eq.s32.totalorder %s28, 1
      %p93 = por %p91, %p92
      %p95 = scmp.ne.s32.totalorder %s80, %s94
      %p96 = scmp.eq.s32.totalorder %s28, 0
      %p97 = por %p95, %p96
      %s99 = sadd.s32 %s98, 1
      %p102 = scmp.eq.s32.totalorder %s22, 1
      %p103 = scmp.ne.s32.totalorder %s98, %s100
      %p104 = scmp.eq.s32.totalorder %s22, 0
      %p105 = por %p103, %p104
      %p106 = scmp.ne.s32.totalorder %s98, %s100
      %p107 = scmp.eq.s32.totalorder %s27, 1
      %p108 = por %p106, %p107
      %p109 = scmp.ne.s32.totalorder %s100, %s101
      %p110 = scmp.eq.s32.totalorder %s27, 0
      %p111 = por %p109, %p110
      %p112 = scmp.ne.s32.totalorder %s100, %s101
      %p113 = scmp.eq.s32.totalorder %s28, 1
      %p114 = por %p112, %p113
      %p116 = scmp.ne.s32.totalorder %s101, %s115
      %p117 = scmp.eq.s32.totalorder %s28, 0
      %p118 = por %p116, %p117
      %s120 = sadd.s32 %s119, 1
      %p123 = scmp.eq.s32.totalorder %s22, 1
      %p124 = scmp.ne.s32.totalorder %s119, %s121
      %p125 = scmp.eq.s32.totalorder %s22, 0
      %p126 = por %p124, %p125
      %p127 = scmp.ne.s32.totalorder %s119, %s121
      %p128 = scmp.eq.s32.totalorder %s27, 1
      %p129 = por %p127, %p128
      %p130 = scmp.ne.s32.totalorder %s121, %s122
      %p131 = scmp.eq.s32.totalorder %s27, 0
      %p132 = por %p130, %p131
      %p133 = scmp.ne.s32.totalorder %s121, %s122
      %p134 = scmp.eq.s32.totalorder %s28, 1
      %p135 = por %p133, %p134
      %p137 = scmp.ne.s32.totalorder %s122, %s136
      %p138 = scmp.eq.s32.totalorder %s28, 0
      %p139 = por %p137, %p138
      %s141 = sadd.s32 %s140, 1
      %p144 = scmp.eq.s32.totalorder %s22, 1
      %p145 = scmp.ne.s32.totalorder %s140, %s142
      %p146 = scmp.eq.s32.totalorder %s22, 0
      %p147 = por %p145, %p146
      %p148 = scmp.ne.s32.totalorder %s140, %s142
      %p149 = scmp.eq.s32.totalorder %s27, 1
      %p150 = por %p148, %p149
      %p151 = scmp.ne.s32.totalorder %s142, %s143
      %p152 = scmp.eq.s32.totalorder %s27, 0
      %p153 = por %p151, %p152
      %p154 = scmp.ne.s32.totalorder %s142, %s143
      %p155 = scmp.eq.s32.totalorder %s28, 1
      %p156 = por %p154, %p155
      %p158 = scmp.ne.s32.totalorder %s143, %s157
      %p159 = scmp.eq.s32.totalorder %s28, 0
      %p160 = por %p158, %p159
      %s162 = sadd.s32 %s161, 1
      %p165 = scmp.eq.s32.totalorder %s22, 1
      %p166 = scmp.ne.s32.totalorder %s161, %s163
      %p167 = scmp.eq.s32.totalorder %s22, 0
      %p168 = por %p166, %p167
      %p169 = scmp.ne.s32.totalorder %s161, %s163
      %p170 = scmp.eq.s32.totalorder %s27, 1
      %p171 = por %p169, %p170
      %p172 = scmp.ne.s32.totalorder %s163, %s164
      %p173 = scmp.eq.s32.totalorder %s27, 0
      %p174 = por %p172, %p173
      %p175 = scmp.ne.s32.totalorder %s163, %s164
      %p176 = scmp.eq.s32.totalorder %s28, 1
      %p177 = por %p175, %p176
      %p179 = scmp.ne.s32.totalorder %s164, %s178
      %p180 = scmp.eq.s32.totalorder %s28, 0
      %p181 = por %p179, %p180
      %s183 = sadd.s32 %s182, 1
      %p186 = scmp.eq.s32.totalorder %s22, 1
      %p187 = scmp.ne.s32.totalorder %s182, %s184
      %p188 = scmp.eq.s32.totalorder %s22, 0
      %p189 = por %p187, %p188
      %p190 = scmp.ne.s32.totalorder %s182, %s184
      %p191 = scmp.eq.s32.totalorder %s27, 1
      %p192 = por %p190, %p191
      %p193 = scmp.ne.s32.totalorder %s184, %s185
      %p194 = scmp.eq.s32.totalorder %s27, 0
      %p195 = por %p193, %p194
      %p196 = scmp.ne.s32.totalorder %s184, %s185
      %p197 = scmp.eq.s32.totalorder %s28, 1
      %p198 = por %p196, %p197
      %p200 = scmp.ne.s32.totalorder %s185, %s199
      %p201 = scmp.eq.s32.totalorder %s28, 0
      %p202 = por %p200, %p201
      %s204 = sadd.s32 %s203, 1
      %p207 = scmp.eq.s32.totalorder %s22, 1
      %p208 = scmp.ne.s32.totalorder %s203, %s205
      %p209 = scmp.eq.s32.totalorder %s22, 0
      %p210 = por %p208, %p209
      %p211 = scmp.ne.s32.totalorder %s203, %s205
      %p212 = scmp.eq.s32.totalorder %s27, 1
      %p213 = por %p211, %p212
      %p214 = scmp.ne.s32.totalorder %s205, %s206
      %p215 = scmp.eq.s32.totalorder %s27, 0
      %p216 = por %p214, %p215
      %p217 = scmp.ne.s32.totalorder %s205, %s206
      %p218 = scmp.eq.s32.totalorder %s28, 1
      %p219 = por %p217, %p218
      %p221 = scmp.ne.s32.totalorder %s206, %s220
      %p222 = scmp.eq.s32.totalorder %s28, 0
      %p223 = por %p221, %p222
      %s225 = sadd.s32 %s224, 1
      %p228 = scmp.eq.s32.totalorder %s22, 1
      %p229 = scmp.ne.s32.totalorder %s224, %s226
      %p230 = scmp.eq.s32.totalorder %s22, 0
      %p231 = por %p229, %p230
      %p232 = scmp.ne.s32.totalorder %s224, %s226
      %p233 = scmp.eq.s32.totalorder %s27, 1
      %p234 = por %p232, %p233
      %p235 = scmp.ne.s32.totalorder %s226, %s227
      %p236 = scmp.eq.s32.totalorder %s27, 0
      %p237 = por %p235, %p236
      %p238 = scmp.ne.s32.totalorder %s226, %s227
      %p239 = scmp.eq.s32.totalorder %s28, 1
      %p240 = por %p238, %p239
      %p242 = scmp.ne.s32.totalorder %s227, %s241
      %p243 = scmp.eq.s32.totalorder %s28, 0
      %p244 = por %p242, %p243
      %s246 = sadd.s32 %s245, 1
      %p249 = scmp.eq.s32.totalorder %s22, 1
      %p250 = scmp.ne.s32.totalorder %s245, %s247
      %p251 = scmp.eq.s32.totalorder %s22, 0
      %p252 = por %p250, %p251
      %p253 = scmp.ne.s32.totalorder %s245, %s247
      %p254 = scmp.eq.s32.totalorder %s27, 1
      %p255 = por %p253, %p254
      %p256 = scmp.ne.s32.totalorder %s247, %s248
      %p257 = scmp.eq.s32.totalorder %s27, 0
      %p258 = por %p256, %p257
      %p259 = scmp.ne.s32.totalorder %s247, %s248
      %p260 = scmp.eq.s32.totalorder %s28, 1
      %p261 = por %p259, %p260
      %p263 = scmp.ne.s32.totalorder %s248, %s262
      %p264 = scmp.eq.s32.totalorder %s28, 0
      %p265 = por %p263, %p264
      %s267 = sadd.s32 %s266, 1
      %p270 = scmp.eq.s32.totalorder %s22, 1
      %p271 = scmp.ne.s32.totalorder %s266, %s268
      %p272 = scmp.eq.s32.totalorder %s22, 0
      %p273 = por %p271, %p272
      %p274 = scmp.ne.s32.totalorder %s266, %s268
      %p275 = scmp.eq.s32.totalorder %s27, 1
      %p276 = por %p274, %p275
      %p277 = scmp.ne.s32.totalorder %s268, %s269
      %p278 = scmp.eq.s32.totalorder %s27, 0
      %p279 = por %p277, %p278
      %p280 = scmp.ne.s32.totalorder %s268, %s269
      %p281 = scmp.eq.s32.totalorder %s28, 1
      %p282 = por %p280, %p281
      %p284 = scmp.ne.s32.totalorder %s269, %s283
      %p285 = scmp.eq.s32.totalorder %s28, 0
      %p286 = por %p284, %p285
      %s288 = sadd.s32 %s287, 1
      %p291 = scmp.eq.s32.totalorder %s22, 1
      %p292 = scmp.ne.s32.totalorder %s287, %s289
      %p293 = scmp.eq.s32.totalorder %s22, 0
      %p294 = por %p292, %p293
      %p295 = scmp.ne.s32.totalorder %s287, %s289
      %p296 = scmp.eq.s32.totalorder %s27, 1
      %p297 = por %p295, %p296
      %p298 = scmp.ne.s32.totalorder %s289, %s290
      %p299 = scmp.eq.s32.totalorder %s27, 0
      %p300 = por %p298, %p299
      %p301 = scmp.ne.s32.totalorder %s289, %s290
      %p302 = scmp.eq.s32.totalorder %s28, 1
      %p303 = por %p301, %p302
      %p305 = scmp.ne.s32.totalorder %s290, %s304
      %p306 = scmp.eq.s32.totalorder %s28, 0
      %p307 = por %p305, %p306
      %s308 = ssub.s32 %s22, %s29
      %p309 = scmp.eq.s32.totalorder %s308, 0
      %s311 = sadd.s32 %s310, 1
      %s312 = scalar_select %p309, %s310, %s311
      %p315 = pneg %p309
      %p316 = scmp.eq.s32.totalorder %s22, 1
      %p317 = por %p315, %p316
      %p318 = scmp.ne.s32.totalorder %s310, %s313
      %p319 = scmp.eq.s32.totalorder %s22, 0
      %p320 = por %p318, %p319
      %p321 = scmp.ne.s32.totalorder %s310, %s313
      %p322 = scmp.eq.s32.totalorder %s27, 1
      %p323 = por %p321, %p322
      %p324 = scmp.ne.s32.totalorder %s313, %s314
      %p325 = scmp.eq.s32.totalorder %s27, 0
      %p326 = por %p324, %p325
      %p327 = scmp.ne.s32.totalorder %s313, %s314
      %p328 = scmp.eq.s32.totalorder %s28, 1
      %p329 = por %p327, %p328
      %p331 = scmp.ne.s32.totalorder %s314, %s330
      %p332 = scmp.eq.s32.totalorder %s28, 0
      %p333 = por %p331, %p332
      %p334 = scmp.le.s32.totalorder 1, %s22
      %p335 = scmp.lt.s32.totalorder %s22, 3
      %p336 = pnand %p334, %p335
      %p337 = pneg %p336
      // Predicated region
      $region9: #{tpu_custom_call.1} parent=5 // pred_check
        _
      $region10: #{tpu_custom_call.1} parent=5 // pred_check_branch
        %339 = sbr.rel (%p336) target = $region12
      $region11: #{tpu_custom_call.1} parent=5 // pred_region
        %s340 = ssub.s32 %s22, 1
        // Predicated region
        $region13: #{tpu_custom_call.1} parent=11 // pred_check
          %p341 = pneg %p69
        $region14: #{tpu_custom_call.1} parent=11 // pred_check_branch
          %343 = sbr.rel (%p341) target = $region16
        $region15: #{tpu_custom_call.1} parent=11 // pred_region
          _
        $region16: #{tpu_custom_call.1} parent=11 // pred_fallthru
          _
        // Predicated region
        $region17: #{tpu_custom_call.1} parent=11 // pred_check
          %p344 = pneg %p90
        $region18: #{tpu_custom_call.1} parent=11 // pred_check_branch
          %346 = sbr.rel (%p344) target = $region20
        $region19: #{tpu_custom_call.1} parent=11 // pred_region
          _
        $region20: #{tpu_custom_call.1} parent=11 // pred_fallthru
          _
        // Predicated region
        $region21: #{tpu_custom_call.1} parent=11 // pred_check
          %p347 = pneg %p111
        $region22: #{tpu_custom_call.1} parent=11 // pred_check_branch
          %349 = sbr.rel (%p347) target = $region24
        $region23: #{tpu_custom_call.1} parent=11 // pred_region
          _
        $region24: #{tpu_custom_call.1} parent=11 // pred_fallthru
          _
        // Predicated region
        $region25: #{tpu_custom_call.1} parent=11 // pred_check
          %p350 = pneg %p132
        $region26: #{tpu_custom_call.1} parent=11 // pred_check_branch
          %352 = sbr.rel (%p350) target = $region28
        $region27: #{tpu_custom_call.1} parent=11 // pred_region
          _
        $region28: #{tpu_custom_call.1} parent=11 // pred_fallthru
          _
        // Predicated region
        $region29: #{tpu_custom_call.1} parent=11 // pred_check
          %p353 = pneg %p153
        $region30: #{tpu_custom_call.1} parent=11 // pred_check_branch
          %355 = sbr.rel (%p353) target = $region32
        $region31: #{tpu_custom_call.1} parent=11 // pred_region
          _
        $region32: #{tpu_custom_call.1} parent=11 // pred_fallthru
          _
        // Predicated region
        $region33: #{tpu_custom_call.1} parent=11 // pred_check
          %p356 = pneg %p174
        $region34: #{tpu_custom_call.1} parent=11 // pred_check_branch
          %358 = sbr.rel (%p356) target = $region36
        $region35: #{tpu_custom_call.1} parent=11 // pred_region
          _
        $region36: #{tpu_custom_call.1} parent=11 // pred_fallthru
          _
        // Predicated region
        $region37: #{tpu_custom_call.1} parent=11 // pred_check
          %p359 = pneg %p195
        $region38: #{tpu_custom_call.1} parent=11 // pred_check_branch
          %361 = sbr.rel (%p359) target = $region40
        $region39: #{tpu_custom_call.1} parent=11 // pred_region
          _
        $region40: #{tpu_custom_call.1} parent=11 // pred_fallthru
          _
        // Predicated region
        $region41: #{tpu_custom_call.1} parent=11 // pred_check
          %p362 = pneg %p216
        $region42: #{tpu_custom_call.1} parent=11 // pred_check_branch
          %364 = sbr.rel (%p362) target = $region44
        $region43: #{tpu_custom_call.1} parent=11 // pred_region
          _
        $region44: #{tpu_custom_call.1} parent=11 // pred_fallthru
          _
        // Predicated region
        $region45: #{tpu_custom_call.1} parent=11 // pred_check
          %p365 = pneg %p237
        $region46: #{tpu_custom_call.1} parent=11 // pred_check_branch
          %367 = sbr.rel (%p365) target = $region48
        $region47: #{tpu_custom_call.1} parent=11 // pred_region
          _
        $region48: #{tpu_custom_call.1} parent=11 // pred_fallthru
          _
        // Predicated region
        $region49: #{tpu_custom_call.1} parent=11 // pred_check
          %p368 = pneg %p258
        $region50: #{tpu_custom_call.1} parent=11 // pred_check_branch
          %370 = sbr.rel (%p368) target = $region52
        $region51: #{tpu_custom_call.1} parent=11 // pred_region
          _
        $region52: #{tpu_custom_call.1} parent=11 // pred_fallthru
          _
        // Predicated region
        $region53: #{tpu_custom_call.1} parent=11 // pred_check
          %p371 = pneg %p279
        $region54: #{tpu_custom_call.1} parent=11 // pred_check_branch
          %373 = sbr.rel (%p371) target = $region56
        $region55: #{tpu_custom_call.1} parent=11 // pred_region
          _
        $region56: #{tpu_custom_call.1} parent=11 // pred_fallthru
          _
        // Predicated region
        $region57: #{tpu_custom_call.1} parent=11 // pred_check
          %p374 = pneg %p300
        $region58: #{tpu_custom_call.1} parent=11 // pred_check_branch
          %376 = sbr.rel (%p374) target = $region60
        $region59: #{tpu_custom_call.1} parent=11 // pred_region
          _
        $region60: #{tpu_custom_call.1} parent=11 // pred_fallthru
          _
      $region12: #{tpu_custom_call.1} parent=5 // pred_fallthru
        _
      %p377 = scmp.lt.s32.totalorder %s22, 2
      // Predicated region
      $region61: #{tpu_custom_call.1} parent=5 // pred_check
        %p378 = pneg %p377
      $region62: #{tpu_custom_call.1} parent=5 // pred_check_branch
        %380 = sbr.rel (%p378) target = $region64
      $region63: #{tpu_custom_call.1} parent=5 // pred_region
        // Predicated region
        $region65: #{tpu_custom_call.1} parent=63 // pred_check
          %p381 = pneg %p42
        $region66: #{tpu_custom_call.1} parent=63 // pred_check_branch
          %383 = sbr.rel (%p381) target = $region68
        $region67: #{tpu_custom_call.1} parent=63 // pred_region
          %p384 = scmp.lt.s32.totalorder %s22, 1
          %s385 = scalar_select %p384, %s22, 1
          %s386 = smul.addr %s385, 2
          %s387 = smul.addr %s386, 8
          %s388 = scalar_lea.vmem %s0, %s387
        $region68: #{tpu_custom_call.1} parent=63 // pred_fallthru
          _
      $region64: #{tpu_custom_call.1} parent=5 // pred_fallthru
        _
      %p389 = scmp.le.s32.totalorder 1, %s22
      %p390 = scmp.lt.s32.totalorder %s22, 3
      %p391 = pnand %p389, %p390
      %p392 = pneg %p391
      // Predicated region
      $region69: #{tpu_custom_call.1} parent=5 // pred_check
        _
      $region70: #{tpu_custom_call.1} parent=5 // pred_check_branch
        %394 = sbr.rel (%p391) target = $region72
      $region71: #{tpu_custom_call.1} parent=5 // pred_region
        %s395 = ssub.s32 %s22, 1
        %p396 = scmp.lt.s32.totalorder %s27, 1
        %s397 = scalar_select %p396, %s27, 1
        %s398 = smul.addr %s397, 2
        %s399 = smul.addr %s398, 8
        %s400 = scalar_lea.vmem %s0, %s399
        %p401 = pneg %p48
        %p402 = pneg %p45
        %p403 = pneg %p69
        %p404 = pneg %p66
        %p405 = pneg %p90
        %p406 = pneg %p87
        %p407 = pneg %p111
        %p408 = pneg %p108
        %p409 = pneg %p132
        %p410 = pneg %p129
        %p411 = pneg %p153
        %p412 = pneg %p150
        %p413 = pneg %p174
        %p414 = pneg %p171
        %p415 = pneg %p195
        %p416 = pneg %p192
        %p417 = pneg %p216
        %p418 = pneg %p213
        %p419 = pneg %p237
        %p420 = pneg %p234
        %p421 = pneg %p258
        %p422 = pneg %p255
        %p423 = pneg %p279
        %p424 = pneg %p276
        %p425 = pneg %p300
        %p426 = pneg %p297
        %p427 = pneg %p326
        %p428 = pneg %p323
        %s429 = sand.u32 %s313, 1
        %s430 = scalar_lea.sflag [#allocation3], %s429
        %s431 = sand.u32 %s313, 1
        %s432 = smul.addr %s431, 16
        %s433 = scalar_lea.vmem [#allocation2], %s432
        %p434 = scmp.lt.s32.totalorder %s27, 1
        %s435 = scalar_select %p434, %s27, 1
        %s436 = smul.addr %s435, 2
        %s437 = smul.addr %s436, 8
        %s438 = scalar_lea.vmem %s0, %s437
        %v439 = vld [vmem:[%s9] sm:$0xff]
        %v440 = vld [vmem:[%s9 + $0x8] sm:$0xff]
        %v441 = vld [vmem:[%s9 + $0x10] sm:$0xff]
        %v442 = vld [vmem:[%s9 + $0x18] sm:$0xff]
        %v443 = vld [vmem:[%s9 + $0x20] sm:$0xff]
        %v444 = vld [vmem:[%s9 + $0x28] sm:$0xff]
        %v445 = vld [vmem:[%s9 + $0x30] sm:$0xff]
        %v446 = vld [vmem:[%s9 + $0x38] sm:$0xff]
        %v447 = vld [vmem:[%s9 + $0x40] sm:$0xff]
        %v448 = vld [vmem:[%s9 + $0x48] sm:$0xff]
        %v449 = vld [vmem:[%s9 + $0x50] sm:$0xff]
        %v450 = vld [vmem:[%s9 + $0x58] sm:$0xff]
        %v451 = vld [vmem:[%s9 + $0x60] sm:$0xff]
        %v452 = vld [vmem:[%s9 + $0x68] sm:$0xff]
        %v453 = vld [vmem:[%s9 + $0x70] sm:$0xff]
        %v454 = vld [vmem:[%s9 + $0x78] sm:$0xff]
        %v455 = vld [vmem:[%s9 + $0x80] sm:$0xff]
        %v456 = vld [vmem:[%s9 + $0x88] sm:$0xff]
        %v457 = vld [vmem:[%s9 + $0x90] sm:$0xff]
        %v458 = vld [vmem:[%s9 + $0x98] sm:$0xff]
        %v459 = vld [vmem:[%s9 + $0xa0] sm:$0xff]
        %v460 = vld [vmem:[%s9 + $0xa8] sm:$0xff]
        %v461 = vld [vmem:[%s9 + $0xb0] sm:$0xff]
        %v462 = vld [vmem:[%s9 + $0xb8] sm:$0xff]
        %v463 = vld [vmem:[%s9 + $0xc0] sm:$0xf]
        %v464 = vld [vmem:[%s10] sm:$0xff]
        %v465 = vld [vmem:[%s10 + $0x8] sm:$0xff]
        %v466 = vrot.slane %v464, 4
        %v467 = vadd.f32 %v464, %v466
        %v468 = vrot.slane %v467, 2
        %v469 = vadd.f32 %v467, %v468
        %v470 = vrot.slane %v469, 1
        %v471 = vadd.f32 %v469, %v470
        %vm472 = vcmask 556032
        %v473 = vsel %vm472, %v465, 0.0
        %v474 = vrot.slane %v473, 4
        %v475 = vadd.f32 %v473, %v474
        %v476 = vrot.slane %v475, 2
        %v477 = vadd.f32 %v475, %v476
        %v478 = vrot.slane %v477, 1
        %v479 = vadd.f32 %v477, %v478
        %v480 = vld [vmem:[%s438] sm:$0xff]
        %v481 = vld [vmem:[%s438 + $0x8] sm:$0xff]
        %484 = vrot.lane.b32.xlu0 %v480, 15
        %v485 = vpop.permute.xlu0 %484
        %486 = vrot.lane.b32.xlu0 %v481, 15
        %v487 = vpop.permute.xlu0 %486
        %vm488 = vcmask 121856
        %v489 = vsel %vm488, %v485, %v487
        %v492 = vsel %vm488, 0.0, %v485
        %vm493 = vcmask 678912
        %v494 = vsel %vm493, %v489, 0.0
        %497 = vrot.lane.b32.xlu0 %v492, 127
        %v498 = vpop.permute.xlu0 %497
        %499 = vrot.lane.b32.xlu0 %v494, 127
        %v500 = vpop.permute.xlu0 %499
        %vm501 = vcmask 1039360
        %v502 = vsel %vm501, %v498, %v500
        %505 = vrot.lane.b32.xlu0 %v492, 126
        %v506 = vpop.permute.xlu0 %505
        %507 = vrot.lane.b32.xlu0 %v494, 126
        %v508 = vpop.permute.xlu0 %507
        %vm509 = vcmask 1031168
        %v510 = vsel %vm509, %v506, %v508
        %513 = vrot.lane.b32.xlu0 %v492, 114
        %v514 = vpop.permute.xlu0 %513
        %515 = vrot.lane.b32.xlu0 %v494, 114
        %v516 = vpop.permute.xlu0 %515
        %vm517 = vcmask 932864
        %v518 = vsel %vm517, %v514, %v516
        %521 = vrot.lane.b32.xlu0 %v492, 113
        %v522 = vpop.permute.xlu0 %521
        %523 = vrot.lane.b32.xlu0 %v494, 113
        %v524 = vpop.permute.xlu0 %523
        %vm525 = vcmask 924672
        %v526 = vsel %vm525, %v522, %v524
        %529 = vrot.lane.b32.xlu0 %v492, 112
        %v530 = vpop.permute.xlu0 %529
        %531 = vrot.lane.b32.xlu0 %v494, 112
        %v532 = vpop.permute.xlu0 %531
        %vm533 = vcmask 916480
        %v534 = vsel %vm533, %v530, %v532
        %537 = vrot.lane.b32.xlu0 %v492, 100
        %v538 = vpop.permute.xlu0 %537
        %539 = vrot.lane.b32.xlu0 %v494, 100
        %v540 = vpop.permute.xlu0 %539
        %vm541 = vcmask 818176
        %v542 = vsel %vm541, %v538, %v540
        %545 = vrot.lane.b32.xlu0 %v492, 99
        %v546 = vpop.permute.xlu0 %545
        %547 = vrot.lane.b32.xlu0 %v494, 99
        %v548 = vpop.permute.xlu0 %547
        %vm549 = vcmask 809984
        %v550 = vsel %vm549, %v546, %v548
        %553 = vrot.lane.b32.xlu0 %v492, 98
        %v554 = vpop.permute.xlu0 %553
        %555 = vrot.lane.b32.xlu0 %v494, 98
        %v556 = vpop.permute.xlu0 %555
        %vm557 = vcmask 801792
        %v558 = vsel %vm557, %v554, %v556
        %v561 = vld [vmem:[%s1] sm:$0xff]
        %vm562 = vcmask 588800
        %v564 = vsel %vm562, %v561, 0
        %566 = vmatprep.subr.mxu0 0.0
        %567 = vmatpush1.msra.mxu0 0.0
        %568 = vmatprep.subr.mxu0 0.0
        %569 = vmatpush1.msra.mxu0 0.0
        %570 = vmatprep.subr.mxu0 0.0
        %571 = vmatpush1.msra.mxu0 0.0
        %572 = vmatprep.subr.mxu0 0.0
        %573 = vmatpush1.msra.mxu0 0.0
        %574 = vmatprep.subr.mxu0 0.0
        %575 = vmatpush1.msra.mxu0 0.0
        %576 = vmatprep.subr.mxu0 0.0
        %577 = vmatpush1.msra.mxu0 0.0
        %578 = vmatprep.subr.mxu0 0.0
        %579 = vmatpush1.msra.mxu0 0.0
        %580 = vmatprep.subr.mxu0 %v556
        %581 = vmatpush1.msra.mxu0 %v558
        %582 = vmatprep.subr.mxu0 %v548
        %583 = vmatpush1.msra.mxu0 %v550
        %584 = vmatprep.subr.mxu0 %v540
        %585 = vmatpush1.msra.mxu0 %v542
        %586 = vmatprep.subr.mxu0 %v532
        %587 = vmatpush1.msra.mxu0 %v534
        %588 = vmatprep.subr.mxu0 %v524
        %589 = vmatpush1.msra.mxu0 %v526
        %590 = vmatprep.subr.mxu0 %v516
        %591 = vmatpush1.msra.mxu0 %v518
        %592 = vmatprep.subr.mxu0 %v508
        %593 = vmatpush1.msra.mxu0 %v510
        %594 = vmatprep.subr.mxu0 %v500
        %595 = vmatpush1.msra.mxu0 %v502
        %596 = vmatprep.subr.mxu0 %v494
        %597 = vmatpush1.msra.mxu0 %v492
        %598 = vmatprep.subr.mxu0 0.0
        %599 = vmatpush2.msra.mxu0 0.0
        %600 = vmatprep.subr.mxu0 0.0
        %601 = vmatpush2.msra.mxu0 0.0
        %602 = vmatprep.subr.mxu0 0.0
        %603 = vmatpush2.msra.mxu0 0.0
        %604 = vmatprep.subr.mxu0 0.0
        %605 = vmatpush2.msra.mxu0 0.0
        %606 = vmatprep.subr.mxu0 0.0
        %607 = vmatpush2.msra.mxu0 0.0
        %608 = vmatprep.subr.mxu0 0.0
        %609 = vmatpush2.msra.mxu0 0.0
        %610 = vmatprep.subr.mxu0 0.0
        %611 = vmatpush2.msra.mxu0 0.0
        %612 = vmatprep.subr.mxu0 0.0
        %613 = vmatpush2.msra.mxu0 0.0
        %614 = vmatprep.subr.mxu0 0.0
        %615 = vmatpush2.msra.mxu0 0.0
        %616 = vmatprep.subr.mxu0 0.0
        %617 = vmatpush2.msra.mxu0 0.0
        %618 = vmatprep.subr.mxu0 0.0
        %619 = vmatpush2.msra.mxu0 0.0
        %620 = vmatprep.subr.mxu0 0.0
        %621 = vmatpush2.msra.mxu0 0.0
        %622 = vmatprep.subr.mxu0 0.0
        %623 = vmatpush2.msra.mxu0 0.0
        %624 = vmatprep.subr.mxu0 0.0
        %625 = vmatpush2.msra.mxu0 0.0
        %626 = vmatprep.subr.mxu0 0.0
        %627 = vmatpush2.msra.mxu0 0.0
        %628 = vmatprep.subr.mxu0 0.0
        %629 = vmatpush2.msra.mxu0 0.0
        %630 = vmatprep.mubr.f32.mxu0 0.0
        %631 = vmatmul.mubr.f32.gmra.mxu0 %v564
        %v632 = vpop.f32.mrf.mxu0
        %v633 = vadd.f32 0.0, %v632
        %v634 = vpop.f32.mrf.mxu0
        %v635 = vadd.f32 0.0, %v634
        %636 = vdwg.mxu0
        %v637 = vld [vmem:[%s11] sm:$0xff]
        %v638 = vld [vmem:[%s2] sm:$0xff]
        %v639 = vld [vmem:[%s3] sm:$0xff]
        %v641 = vsel %vm472, %v635, 0
        %vm643 = vcmask 1043456
        %v645 = vsel %vm643, %v463, 0
        %647 = vmatprep.subr.mxu0 0.0
        %648 = vmatpush1.msra.mxu0 %v454
        %649 = vmatprep.subr.mxu0 0.0
        %650 = vmatpush1.msra.mxu0 %v453
        %651 = vmatprep.subr.mxu0 0.0
        %652 = vmatpush1.msra.mxu0 %v452
        %653 = vmatprep.subr.mxu0 0.0
        %654 = vmatpush1.msra.mxu0 %v451
        %655 = vmatprep.subr.mxu0 0.0
        %656 = vmatpush1.msra.mxu0 %v450
        %657 = vmatprep.subr.mxu0 0.0
        %658 = vmatpush1.msra.mxu0 %v449
        %659 = vmatprep.subr.mxu0 0.0
        %660 = vmatpush1.msra.mxu0 %v448
        %661 = vmatprep.subr.mxu0 0.0
        %662 = vmatpush1.msra.mxu0 %v447
        %663 = vmatprep.subr.mxu0 0.0
        %664 = vmatpush1.msra.mxu0 %v446
        %665 = vmatprep.subr.mxu0 0.0
        %666 = vmatpush1.msra.mxu0 %v445
        %667 = vmatprep.subr.mxu0 0.0
        %668 = vmatpush1.msra.mxu0 %v444
        %669 = vmatprep.subr.mxu0 0.0
        %670 = vmatpush1.msra.mxu0 %v443
        %671 = vmatprep.subr.mxu0 0.0
        %672 = vmatpush1.msra.mxu0 %v442
        %673 = vmatprep.subr.mxu0 0.0
        %674 = vmatpush1.msra.mxu0 %v441
        %675 = vmatprep.subr.mxu0 0.0
        %676 = vmatpush1.msra.mxu0 %v440
        %677 = vmatprep.subr.mxu0 0.0
        %678 = vmatpush1.msra.mxu0 %v439
        %679 = vmatprep.subr.mxu0 0.0
        %680 = vmatpush2.msra.mxu0 0.0
        %681 = vmatprep.subr.mxu0 0.0
        %682 = vmatpush2.msra.mxu0 0.0
        %683 = vmatprep.subr.mxu0 0.0
        %684 = vmatpush2.msra.mxu0 0.0
        %685 = vmatprep.subr.mxu0 0.0
        %686 = vmatpush2.msra.mxu0 0.0
        %687 = vmatprep.subr.mxu0 0.0
        %688 = vmatpush2.msra.mxu0 0.0
        %689 = vmatprep.subr.mxu0 0.0
        %690 = vmatpush2.msra.mxu0 0.0
        %691 = vmatprep.subr.mxu0 0.0
        %692 = vmatpush2.msra.mxu0 0.0
        %693 = vmatprep.subr.mxu0 0.0
        %694 = vmatpush2.msra.mxu0 %v645
        %695 = vmatprep.subr.mxu0 0.0
        %696 = vmatpush2.msra.mxu0 %v462
        %697 = vmatprep.subr.mxu0 0.0
        %698 = vmatpush2.msra.mxu0 %v461
        %699 = vmatprep.subr.mxu0 0.0
        %700 = vmatpush2.msra.mxu0 %v460
        %701 = vmatprep.subr.mxu0 0.0
        %702 = vmatpush2.msra.mxu0 %v459
        %703 = vmatprep.subr.mxu0 0.0
        %704 = vmatpush2.msra.mxu0 %v458
        %705 = vmatprep.subr.mxu0 0.0
        %706 = vmatpush2.msra.mxu0 %v457
        %707 = vmatprep.subr.mxu0 0.0
        %708 = vmatpush2.msra.mxu0 %v456
        %709 = vmatprep.subr.mxu0 0.0
        %710 = vmatpush2.msra.mxu0 %v455
        %711 = vmatprep.mubr.f32.mxu0 %v641
        %712 = vmatmul.mubr.f32.gmra.mxu0 %v633
        %v713 = vpop.f32.mrf.mxu0
        %v714 = vadd.f32 0.0, %v713
        %v715 = vpop.f32.mrf.mxu0
        %716 = vdwg.mxu0
        %vm717 = vcmask 64512
        %v719 = vsel %vm717, %v637, 0
        %721 = vmatprep.subr.mxu0 0.0
        %722 = vmatpush1.msra.mxu0 0.0
        %723 = vmatprep.subr.mxu0 0.0
        %724 = vmatpush1.msra.mxu0 0.0
        %725 = vmatprep.subr.mxu0 0.0
        %726 = vmatpush1.msra.mxu0 0.0
        %727 = vmatprep.subr.mxu0 0.0
        %728 = vmatpush1.msra.mxu0 0.0
        %729 = vmatprep.subr.mxu0 0.0
        %730 = vmatpush1.msra.mxu0 0.0
        %731 = vmatprep.subr.mxu0 0.0
        %732 = vmatpush1.msra.mxu0 0.0
        %733 = vmatprep.subr.mxu0 0.0
        %734 = vmatpush1.msra.mxu0 0.0
        %735 = vmatprep.subr.mxu0 0.0
        %736 = vmatpush1.msra.mxu0 0.0
        %737 = vmatprep.subr.mxu0 0.0
        %738 = vmatpush1.msra.mxu0 0.0
        %739 = vmatprep.subr.mxu0 0.0
        %740 = vmatpush1.msra.mxu0 0.0
        %741 = vmatprep.subr.mxu0 0.0
        %742 = vmatpush1.msra.mxu0 0.0
        %743 = vmatprep.subr.mxu0 0.0
        %744 = vmatpush1.msra.mxu0 0.0
        %745 = vmatprep.subr.mxu0 0.0
        %746 = vmatpush1.msra.mxu0 0.0
        %747 = vmatprep.subr.mxu0 0.0
        %748 = vmatpush1.msra.mxu0 0.0
        %749 = vmatprep.subr.mxu0 0.0
        %750 = vmatpush1.msra.mxu0 0.0
        %751 = vmatprep.subr.mxu0 0.0
        %752 = vmatpush1.msra.mxu0 %v714
        %753 = vmatprep.subr.mxu0 0.0
        %754 = vmatpush2.msra.mxu0 0.0
        %755 = vmatprep.subr.mxu0 0.0
        %756 = vmatpush2.msra.mxu0 0.0
        %757 = vmatprep.subr.mxu0 0.0
        %758 = vmatpush2.msra.mxu0 0.0
        %759 = vmatprep.subr.mxu0 0.0
        %760 = vmatpush2.msra.mxu0 0.0
        %761 = vmatprep.subr.mxu0 0.0
        %762 = vmatpush2.msra.mxu0 0.0
        %763 = vmatprep.subr.mxu0 0.0
        %764 = vmatpush2.msra.mxu0 0.0
        %765 = vmatprep.subr.mxu0 0.0
        %766 = vmatpush2.msra.mxu0 0.0
        %767 = vmatprep.subr.mxu0 0.0
        %768 = vmatpush2.msra.mxu0 0.0
        %769 = vmatprep.subr.mxu0 0.0
        %770 = vmatpush2.msra.mxu0 0.0
        %771 = vmatprep.subr.mxu0 0.0
        %772 = vmatpush2.msra.mxu0 0.0
        %773 = vmatprep.subr.mxu0 0.0
        %774 = vmatpush2.msra.mxu0 0.0
        %775 = vmatprep.subr.mxu0 0.0
        %776 = vmatpush2.msra.mxu0 0.0
        %777 = vmatprep.subr.mxu0 0.0
        %778 = vmatpush2.msra.mxu0 0.0
        %779 = vmatprep.subr.mxu0 0.0
        %780 = vmatpush2.msra.mxu0 0.0
        %781 = vmatprep.subr.mxu0 0.0
        %782 = vmatpush2.msra.mxu0 0.0
        %783 = vmatprep.subr.mxu0 0.0
        %784 = vmatpush2.msra.mxu0 0.0
        %785 = vmatprep.mubr.f32.mxu0 0.0
        %786 = vmatmul.mubr.f32.gmra.mxu0 %v719
        %v787 = vpop.f32.mrf.mxu0
        %v788 = vadd.f32 0.0, %v787
        %v789 = vpop.f32.mrf.mxu0
        %790 = vdwg.mxu0
        %v791 = vmul.f32 %v788, 0.00086805556
        %793 = vset.pattern.permute.xlu0 0
        %794 = vperm.xlu0 %793, %v791
        %v795 = vpop.permute.xlu0 %794
        %v797 = vlaneseq
        %v798 = vshrl.u32 %v797, 7
        %v799 = vsub.s32 0, %v798
        %v800 = vrot.slane %v464, %v799
        %v801 = vlaneseq
        %v802 = vshrl.u32 %v801, 7
        %v803 = vsub.s32 0, %v802
        %v804 = vrot.slane %v465, %v803
        %v805 = vmul.f32 %v795, %v800
        %v806 = vmul.f32 %v795, %v804
        %807 = vset.pattern.permute.xlu0 1
        %808 = vperm.xlu0 %807, %v791
        %v809 = vpop.permute.xlu0 %808
        %v811 = vlaneseq
        %v812 = vshrl.u32 %v811, 7
        %v813 = vsub.s32 1, %v812
        %v814 = vrot.slane %v464, %v813
        %v815 = vlaneseq
        %v816 = vshrl.u32 %v815, 7
        %v817 = vsub.s32 1, %v816
        %v818 = vrot.slane %v465, %v817
        %v819 = vmul.f32 %v809, %v814
        %v820 = vmul.f32 %v809, %v818
        %v821 = vadd.f32 %v805, %v819
        %v822 = vadd.f32 %v806, %v820
        %823 = vset.pattern.permute.xlu0 2
        %824 = vperm.xlu0 %823, %v791
        %v825 = vpop.permute.xlu0 %824
        %v827 = vlaneseq
        %v828 = vshrl.u32 %v827, 7
        %v829 = vsub.s32 2, %v828
        %v830 = vrot.slane %v464, %v829
        %v831 = vlaneseq
        %v832 = vshrl.u32 %v831, 7
        %v833 = vsub.s32 2, %v832
        %v834 = vrot.slane %v465, %v833
        %v835 = vmul.f32 %v825, %v830
        %v836 = vmul.f32 %v825, %v834
        %v837 = vadd.f32 %v821, %v835
        %v838 = vadd.f32 %v822, %v836
        %839 = vset.pattern.permute.xlu0 3
        %840 = vperm.xlu0 %839, %v791
        %v841 = vpop.permute.xlu0 %840
        %v843 = vlaneseq
        %v844 = vshrl.u32 %v843, 7
        %v845 = vsub.s32 3, %v844
        %v846 = vrot.slane %v464, %v845
        %v847 = vlaneseq
        %v848 = vshrl.u32 %v847, 7
        %v849 = vsub.s32 3, %v848
        %v850 = vrot.slane %v465, %v849
        %v851 = vmul.f32 %v841, %v846
        %v852 = vmul.f32 %v841, %v850
        %v853 = vadd.f32 %v837, %v851
        %v854 = vadd.f32 %v838, %v852
        %855 = vset.pattern.permute.xlu0 4
        %856 = vperm.xlu0 %855, %v791
        %v857 = vpop.permute.xlu0 %856
        %v859 = vlaneseq
        %v860 = vshrl.u32 %v859, 7
        %v861 = vsub.s32 4, %v860
        %v862 = vrot.slane %v464, %v861
        %v863 = vlaneseq
        %v864 = vshrl.u32 %v863, 7
        %v865 = vsub.s32 4, %v864
        %v866 = vrot.slane %v465, %v865
        %v867 = vmul.f32 %v857, %v862
        %v868 = vmul.f32 %v857, %v866
        %v869 = vadd.f32 %v853, %v867
        %v870 = vadd.f32 %v854, %v868
        %871 = vset.pattern.permute.xlu0 5
        %872 = vperm.xlu0 %871, %v791
        %v873 = vpop.permute.xlu0 %872
        %v875 = vlaneseq
        %v876 = vshrl.u32 %v875, 7
        %v877 = vsub.s32 5, %v876
        %v878 = vrot.slane %v464, %v877
        %v879 = vlaneseq
        %v880 = vshrl.u32 %v879, 7
        %v881 = vsub.s32 5, %v880
        %v882 = vrot.slane %v465, %v881
        %v883 = vmul.f32 %v873, %v878
        %v884 = vmul.f32 %v873, %v882
        %v885 = vadd.f32 %v869, %v883
        %v886 = vadd.f32 %v870, %v884
        %887 = vset.pattern.permute.xlu0 6
        %888 = vperm.xlu0 %887, %v791
        %v889 = vpop.permute.xlu0 %888
        %v891 = vlaneseq
        %v892 = vshrl.u32 %v891, 7
        %v893 = vsub.s32 6, %v892
        %v894 = vrot.slane %v464, %v893
        %v895 = vlaneseq
        %v896 = vshrl.u32 %v895, 7
        %v897 = vsub.s32 6, %v896
        %v898 = vrot.slane %v465, %v897
        %v899 = vmul.f32 %v889, %v894
        %v900 = vmul.f32 %v889, %v898
        %v901 = vadd.f32 %v885, %v899
        %v902 = vadd.f32 %v886, %v900
        %903 = vset.pattern.permute.xlu0 7
        %904 = vperm.xlu0 %903, %v791
        %v905 = vpop.permute.xlu0 %904
        %v907 = vlaneseq
        %v908 = vshrl.u32 %v907, 7
        %v909 = vsub.s32 7, %v908
        %v910 = vrot.slane %v464, %v909
        %v911 = vlaneseq
        %v912 = vshrl.u32 %v911, 7
        %v913 = vsub.s32 7, %v912
        %v914 = vrot.slane %v465, %v913
        %v915 = vmul.f32 %v905, %v910
        %v916 = vmul.f32 %v905, %v914
        %v917 = vadd.f32 %v901, %v915
        %v918 = vadd.f32 %v902, %v916
        %v919 = vsub.f32 %v633, %v917
        %v920 = vsub.f32 %v635, %v918
        %v921 = vmul.f32 %v919, %v919
        %v922 = vmul.f32 %v920, %v920
        %v924 = vsel %vm472, %v922, 0
        %926 = vmatprep.subr.mxu0 0.0
        %927 = vmatpush1.msra.mxu0 %v454
        %928 = vmatprep.subr.mxu0 0.0
        %929 = vmatpush1.msra.mxu0 %v453
        %930 = vmatprep.subr.mxu0 0.0
        %931 = vmatpush1.msra.mxu0 %v452
        %932 = vmatprep.subr.mxu0 0.0
        %933 = vmatpush1.msra.mxu0 %v451
        %934 = vmatprep.subr.mxu0 0.0
        %935 = vmatpush1.msra.mxu0 %v450
        %936 = vmatprep.subr.mxu0 0.0
        %937 = vmatpush1.msra.mxu0 %v449
        %938 = vmatprep.subr.mxu0 0.0
        %939 = vmatpush1.msra.mxu0 %v448
        %940 = vmatprep.subr.mxu0 0.0
        %941 = vmatpush1.msra.mxu0 %v447
        %942 = vmatprep.subr.mxu0 0.0
        %943 = vmatpush1.msra.mxu0 %v446
        %944 = vmatprep.subr.mxu0 0.0
        %945 = vmatpush1.msra.mxu0 %v445
        %946 = vmatprep.subr.mxu0 0.0
        %947 = vmatpush1.msra.mxu0 %v444
        %948 = vmatprep.subr.mxu0 0.0
        %949 = vmatpush1.msra.mxu0 %v443
        %950 = vmatprep.subr.mxu0 0.0
        %951 = vmatpush1.msra.mxu0 %v442
        %952 = vmatprep.subr.mxu0 0.0
        %953 = vmatpush1.msra.mxu0 %v441
        %954 = vmatprep.subr.mxu0 0.0
        %955 = vmatpush1.msra.mxu0 %v440
        %956 = vmatprep.subr.mxu0 0.0
        %957 = vmatpush1.msra.mxu0 %v439
        %958 = vmatprep.subr.mxu0 0.0
        %959 = vmatpush2.msra.mxu0 0.0
        %960 = vmatprep.subr.mxu0 0.0
        %961 = vmatpush2.msra.mxu0 0.0
        %962 = vmatprep.subr.mxu0 0.0
        %963 = vmatpush2.msra.mxu0 0.0
        %964 = vmatprep.subr.mxu0 0.0
        %965 = vmatpush2.msra.mxu0 0.0
        %966 = vmatprep.subr.mxu0 0.0
        %967 = vmatpush2.msra.mxu0 0.0
        %968 = vmatprep.subr.mxu0 0.0
        %969 = vmatpush2.msra.mxu0 0.0
        %970 = vmatprep.subr.mxu0 0.0
        %971 = vmatpush2.msra.mxu0 0.0
        %972 = vmatprep.subr.mxu0 0.0
        %973 = vmatpush2.msra.mxu0 %v645
        %974 = vmatprep.subr.mxu0 0.0
        %975 = vmatpush2.msra.mxu0 %v462
        %976 = vmatprep.subr.mxu0 0.0
        %977 = vmatpush2.msra.mxu0 %v461
        %978 = vmatprep.subr.mxu0 0.0
        %979 = vmatpush2.msra.mxu0 %v460
        %980 = vmatprep.subr.mxu0 0.0
        %981 = vmatpush2.msra.mxu0 %v459
        %982 = vmatprep.subr.mxu0 0.0
        %983 = vmatpush2.msra.mxu0 %v458
        %984 = vmatprep.subr.mxu0 0.0
        %985 = vmatpush2.msra.mxu0 %v457
        %986 = vmatprep.subr.mxu0 0.0
        %987 = vmatpush2.msra.mxu0 %v456
        %988 = vmatprep.subr.mxu0 0.0
        %989 = vmatpush2.msra.mxu0 %v455
        %990 = vmatprep.mubr.f32.mxu0 %v924
        %991 = vmatmul.mubr.f32.gmra.mxu0 %v921
        %v992 = vpop.f32.mrf.mxu0
        %v993 = vadd.f32 0.0, %v992
        %v994 = vpop.f32.mrf.mxu0
        %995 = vdwg.mxu0
        %996 = vmatprep.subr.mxu0 0.0
        %997 = vmatpush1.msra.mxu0 0.0
        %998 = vmatprep.subr.mxu0 0.0
        %999 = vmatpush1.msra.mxu0 0.0
        %1000 = vmatprep.subr.mxu0 0.0
        %1001 = vmatpush1.msra.mxu0 0.0
        %1002 = vmatprep.subr.mxu0 0.0
        %1003 = vmatpush1.msra.mxu0 0.0
        %1004 = vmatprep.subr.mxu0 0.0
        %1005 = vmatpush1.msra.mxu0 0.0
        %1006 = vmatprep.subr.mxu0 0.0
        %1007 = vmatpush1.msra.mxu0 0.0
        %1008 = vmatprep.subr.mxu0 0.0
        %1009 = vmatpush1.msra.mxu0 0.0
        %1010 = vmatprep.subr.mxu0 0.0
        %1011 = vmatpush1.msra.mxu0 0.0
        %1012 = vmatprep.subr.mxu0 0.0
        %1013 = vmatpush1.msra.mxu0 0.0
        %1014 = vmatprep.subr.mxu0 0.0
        %1015 = vmatpush1.msra.mxu0 0.0
        %1016 = vmatprep.subr.mxu0 0.0
        %1017 = vmatpush1.msra.mxu0 0.0
        %1018 = vmatprep.subr.mxu0 0.0
        %1019 = vmatpush1.msra.mxu0 0.0
        %1020 = vmatprep.subr.mxu0 0.0
        %1021 = vmatpush1.msra.mxu0 0.0
        %1022 = vmatprep.subr.mxu0 0.0
        %1023 = vmatpush1.msra.mxu0 0.0
        %1024 = vmatprep.subr.mxu0 0.0
        %1025 = vmatpush1.msra.mxu0 0.0
        %1026 = vmatprep.subr.mxu0 0.0
        %1027 = vmatpush1.msra.mxu0 %v993
        %1028 = vmatprep.subr.mxu0 0.0
        %1029 = vmatpush2.msra.mxu0 0.0
        %1030 = vmatprep.subr.mxu0 0.0
        %1031 = vmatpush2.msra.mxu0 0.0
        %1032 = vmatprep.subr.mxu0 0.0
        %1033 = vmatpush2.msra.mxu0 0.0
        %1034 = vmatprep.subr.mxu0 0.0
        %1035 = vmatpush2.msra.mxu0 0.0
        %1036 = vmatprep.subr.mxu0 0.0
        %1037 = vmatpush2.msra.mxu0 0.0
        %1038 = vmatprep.subr.mxu0 0.0
        %1039 = vmatpush2.msra.mxu0 0.0
        %1040 = vmatprep.subr.mxu0 0.0
        %1041 = vmatpush2.msra.mxu0 0.0
        %1042 = vmatprep.subr.mxu0 0.0
        %1043 = vmatpush2.msra.mxu0 0.0
        %1044 = vmatprep.subr.mxu0 0.0
        %1045 = vmatpush2.msra.mxu0 0.0
        %1046 = vmatprep.subr.mxu0 0.0
        %1047 = vmatpush2.msra.mxu0 0.0
        %1048 = vmatprep.subr.mxu0 0.0
        %1049 = vmatpush2.msra.mxu0 0.0
        %1050 = vmatprep.subr.mxu0 0.0
        %1051 = vmatpush2.msra.mxu0 0.0
        %1052 = vmatprep.subr.mxu0 0.0
        %1053 = vmatpush2.msra.mxu0 0.0
        %1054 = vmatprep.subr.mxu0 0.0
        %1055 = vmatpush2.msra.mxu0 0.0
        %1056 = vmatprep.subr.mxu0 0.0
        %1057 = vmatpush2.msra.mxu0 0.0
        %1058 = vmatprep.subr.mxu0 0.0
        %1059 = vmatpush2.msra.mxu0 0.0
        %1060 = vmatprep.mubr.f32.mxu0 0.0
        %1061 = vmatmul.mubr.f32.gmra.mxu0 %v719
        %v1062 = vpop.f32.mrf.mxu0
        %v1063 = vadd.f32 0.0, %v1062
        %v1064 = vpop.f32.mrf.mxu0
        %1065 = vdwg.mxu0
        %v1066 = vmul.f32 %v1063, 0.00086805556
        %v1067 = vadd.f32 %v1066, 1e-05
        %v1068 = vrsqrt.pop %v1067
        %1070 = vset.pattern.permute.xlu0 0
        %1071 = vperm.xlu0 %1070, %v1068
        %v1072 = vpop.permute.xlu0 %1071
        %v1074 = vmul.f32 %v1072, %v800
        %v1075 = vmul.f32 %v1072, %v804
        %1076 = vset.pattern.permute.xlu0 1
        %1077 = vperm.xlu0 %1076, %v1068
        %v1078 = vpop.permute.xlu0 %1077
        %v1080 = vmul.f32 %v1078, %v814
        %v1081 = vmul.f32 %v1078, %v818
        %v1082 = vadd.f32 %v1074, %v1080
        %v1083 = vadd.f32 %v1075, %v1081
        %1084 = vset.pattern.permute.xlu0 2
        %1085 = vperm.xlu0 %1084, %v1068
        %v1086 = vpop.permute.xlu0 %1085
        %v1088 = vmul.f32 %v1086, %v830
        %v1089 = vmul.f32 %v1086, %v834
        %v1090 = vadd.f32 %v1082, %v1088
        %v1091 = vadd.f32 %v1083, %v1089
        %1092 = vset.pattern.permute.xlu0 3
        %1093 = vperm.xlu0 %1092, %v1068
        %v1094 = vpop.permute.xlu0 %1093
        %v1096 = vmul.f32 %v1094, %v846
        %v1097 = vmul.f32 %v1094, %v850
        %v1098 = vadd.f32 %v1090, %v1096
        %v1099 = vadd.f32 %v1091, %v1097
        %1100 = vset.pattern.permute.xlu0 4
        %1101 = vperm.xlu0 %1100, %v1068
        %v1102 = vpop.permute.xlu0 %1101
        %v1104 = vmul.f32 %v1102, %v862
        %v1105 = vmul.f32 %v1102, %v866
        %v1106 = vadd.f32 %v1098, %v1104
        %v1107 = vadd.f32 %v1099, %v1105
        %1108 = vset.pattern.permute.xlu0 5
        %1109 = vperm.xlu0 %1108, %v1068
        %v1110 = vpop.permute.xlu0 %1109
        %v1112 = vmul.f32 %v1110, %v878
        %v1113 = vmul.f32 %v1110, %v882
        %v1114 = vadd.f32 %v1106, %v1112
        %v1115 = vadd.f32 %v1107, %v1113
        %1116 = vset.pattern.permute.xlu0 6
        %1117 = vperm.xlu0 %1116, %v1068
        %v1118 = vpop.permute.xlu0 %1117
        %v1120 = vmul.f32 %v1118, %v894
        %v1121 = vmul.f32 %v1118, %v898
        %v1122 = vadd.f32 %v1114, %v1120
        %v1123 = vadd.f32 %v1115, %v1121
        %1124 = vset.pattern.permute.xlu0 7
        %1125 = vperm.xlu0 %1124, %v1068
        %v1126 = vpop.permute.xlu0 %1125
        %v1128 = vmul.f32 %v1126, %v910
        %v1129 = vmul.f32 %v1126, %v914
        %v1130 = vadd.f32 %v1122, %v1128
        %v1131 = vadd.f32 %v1123, %v1129
        %v1132 = vmul.f32 %v919, %v1130
        %v1133 = vmul.f32 %v920, %v1131
        %1135 = vset.pattern.permute.xlu0 0
        %1136 = vperm.xlu0 %1135, %v638
        %v1137 = vpop.permute.xlu0 %1136
        %v1139 = vmul.f32 %v1132, %v1137
        %v1140 = vmul.f32 %v1133, %v1137
        %1142 = vset.pattern.permute.xlu0 0
        %1143 = vperm.xlu0 %1142, %v639
        %v1144 = vpop.permute.xlu0 %1143
        %v1146 = vadd.f32 %v1139, %v1144
        %v1147 = vadd.f32 %v1140, %v1144
        %v1148 = vmax.f32 %v1146, 0.0
        %v1149 = vmax.f32 %v1147, 0.0
        %v1150 = vmul.f32 %v1148, %v471
        %v1151 = vmul.f32 %v1149, %v479
        %1154 = vrot.lane.b32.xlu0 %v1150, 15
        %v1155 = vpop.permute.xlu0 %1154
        %1156 = vrot.lane.b32.xlu0 %v1151, 15
        %v1157 = vpop.permute.xlu0 %1156
        %v1158 = vsel %vm488, %v1155, %v1157
        %v1161 = vsel %vm488, 0.0, %v1155
        %v1162 = vsel %vm493, %v1158, 0.0
        %1165 = vrot.lane.b32.xlu0 %v1161, 127
        %v1166 = vpop.permute.xlu0 %1165
        %1167 = vrot.lane.b32.xlu0 %v1162, 127
        %v1168 = vpop.permute.xlu0 %1167
        %v1169 = vsel %vm501, %v1166, %v1168
        %1172 = vrot.lane.b32.xlu0 %v1161, 126
        %v1173 = vpop.permute.xlu0 %1172
        %1174 = vrot.lane.b32.xlu0 %v1162, 126
        %v1175 = vpop.permute.xlu0 %1174
        %v1176 = vsel %vm509, %v1173, %v1175
        %1179 = vrot.lane.b32.xlu0 %v1161, 114
        %v1180 = vpop.permute.xlu0 %1179
        %1181 = vrot.lane.b32.xlu0 %v1162, 114
        %v1182 = vpop.permute.xlu0 %1181
        %v1183 = vsel %vm517, %v1180, %v1182
        %1186 = vrot.lane.b32.xlu0 %v1161, 113
        %v1187 = vpop.permute.xlu0 %1186
        %1188 = vrot.lane.b32.xlu0 %v1162, 113
        %v1189 = vpop.permute.xlu0 %1188
        %v1190 = vsel %vm525, %v1187, %v1189
        %1193 = vrot.lane.b32.xlu0 %v1161, 112
        %v1194 = vpop.permute.xlu0 %1193
        %1195 = vrot.lane.b32.xlu0 %v1162, 112
        %v1196 = vpop.permute.xlu0 %1195
        %v1197 = vsel %vm533, %v1194, %v1196
        %1200 = vrot.lane.b32.xlu0 %v1161, 100
        %v1201 = vpop.permute.xlu0 %1200
        %1202 = vrot.lane.b32.xlu0 %v1162, 100
        %v1203 = vpop.permute.xlu0 %1202
        %v1204 = vsel %vm541, %v1201, %v1203
        %1207 = vrot.lane.b32.xlu0 %v1161, 99
        %v1208 = vpop.permute.xlu0 %1207
        %1209 = vrot.lane.b32.xlu0 %v1162, 99
        %v1210 = vpop.permute.xlu0 %1209
        %v1211 = vsel %vm549, %v1208, %v1210
        %1214 = vrot.lane.b32.xlu0 %v1161, 98
        %v1215 = vpop.permute.xlu0 %1214
        %1216 = vrot.lane.b32.xlu0 %v1162, 98
        %v1217 = vpop.permute.xlu0 %1216
        %v1218 = vsel %vm557, %v1215, %v1217
        %v1221 = vld [vmem:[%s4] sm:$0xff]
        %v1222 = vld [vmem:[%s4 + $0x8] sm:$0xff]
        %v1224 = vsel %vm562, %v1221, 0
        %v1227 = vsel %vm562, %v1222, 0
        %1229 = vmatprep.subr.mxu0 0.0
        %1230 = vmatpush1.msra.mxu0 0.0
        %1231 = vmatprep.subr.mxu0 0.0
        %1232 = vmatpush1.msra.mxu0 0.0
        %1233 = vmatprep.subr.mxu0 0.0
        %1234 = vmatpush1.msra.mxu0 0.0
        %1235 = vmatprep.subr.mxu0 0.0
        %1236 = vmatpush1.msra.mxu0 0.0
        %1237 = vmatprep.subr.mxu0 0.0
        %1238 = vmatpush1.msra.mxu0 0.0
        %1239 = vmatprep.subr.mxu0 0.0
        %1240 = vmatpush1.msra.mxu0 0.0
        %1241 = vmatprep.subr.mxu0 0.0
        %1242 = vmatpush1.msra.mxu0 0.0
        %1243 = vmatprep.subr.mxu0 %v1217
        %1244 = vmatpush1.msra.mxu0 %v1218
        %1245 = vmatprep.subr.mxu0 %v1210
        %1246 = vmatpush1.msra.mxu0 %v1211
        %1247 = vmatprep.subr.mxu0 %v1203
        %1248 = vmatpush1.msra.mxu0 %v1204
        %1249 = vmatprep.subr.mxu0 %v1196
        %1250 = vmatpush1.msra.mxu0 %v1197
        %1251 = vmatprep.subr.mxu0 %v1189
        %1252 = vmatpush1.msra.mxu0 %v1190
        %1253 = vmatprep.subr.mxu0 %v1182
        %1254 = vmatpush1.msra.mxu0 %v1183
        %1255 = vmatprep.subr.mxu0 %v1175
        %1256 = vmatpush1.msra.mxu0 %v1176
        %1257 = vmatprep.subr.mxu0 %v1168
        %1258 = vmatpush1.msra.mxu0 %v1169
        %1259 = vmatprep.subr.mxu0 %v1162
        %1260 = vmatpush1.msra.mxu0 %v1161
        %1261 = vmatprep.subr.mxu0 0.0
        %1262 = vmatpush2.msra.mxu0 0.0
        %1263 = vmatprep.subr.mxu0 0.0
        %1264 = vmatpush2.msra.mxu0 0.0
        %1265 = vmatprep.subr.mxu0 0.0
        %1266 = vmatpush2.msra.mxu0 0.0
        %1267 = vmatprep.subr.mxu0 0.0
        %1268 = vmatpush2.msra.mxu0 0.0
        %1269 = vmatprep.subr.mxu0 0.0
        %1270 = vmatpush2.msra.mxu0 0.0
        %1271 = vmatprep.subr.mxu0 0.0
        %1272 = vmatpush2.msra.mxu0 0.0
        %1273 = vmatprep.subr.mxu0 0.0
        %1274 = vmatpush2.msra.mxu0 0.0
        %1275 = vmatprep.subr.mxu0 0.0
        %1276 = vmatpush2.msra.mxu0 0.0
        %1277 = vmatprep.subr.mxu0 0.0
        %1278 = vmatpush2.msra.mxu0 0.0
        %1279 = vmatprep.subr.mxu0 0.0
        %1280 = vmatpush2.msra.mxu0 0.0
        %1281 = vmatprep.subr.mxu0 0.0
        %1282 = vmatpush2.msra.mxu0 0.0
        %1283 = vmatprep.subr.mxu0 0.0
        %1284 = vmatpush2.msra.mxu0 0.0
        %1285 = vmatprep.subr.mxu0 0.0
        %1286 = vmatpush2.msra.mxu0 0.0
        %1287 = vmatprep.subr.mxu0 0.0
        %1288 = vmatpush2.msra.mxu0 0.0
        %1289 = vmatprep.subr.mxu0 0.0
        %1290 = vmatpush2.msra.mxu0 0.0
        %1291 = vmatprep.subr.mxu0 0.0
        %1292 = vmatpush2.msra.mxu0 0.0
        %1293 = vmatprep.mubr.f32.mxu0 0.0
        %1294 = vmatmul.mubr.f32.gmra.mxu0 %v1224
        %v1295 = vpop.f32.mrf.mxu0
        %v1296 = vadd.f32 0.0, %v1295
        %v1297 = vpop.f32.mrf.mxu0
        %v1298 = vadd.f32 0.0, %v1297
        %1299 = vmatprep.mubr.f32.mxu0 0.0
        %1300 = vmatmul.mubr.f32.gmra.mxu0 %v1227
        %v1301 = vpop.f32.mrf.mxu0
        %v1302 = vadd.f32 0.0, %v1301
        %v1303 = vpop.f32.mrf.mxu0
        %v1304 = vadd.f32 0.0, %v1303
        %1305 = vdwg.mxu0
        %v1306 = vld [vmem:[%s12] sm:$0xff]
        %v1307 = vld [vmem:[%s12 + $0x8] sm:$0xff]
        %v1308 = vld [vmem:[%s5] sm:$0xff]
        %v1309 = vld [vmem:[%s5 + $0x8] sm:$0xff]
        %v1310 = vld [vmem:[%s6] sm:$0xff]
        %v1311 = vld [vmem:[%s6 + $0x8] sm:$0xff]
        %v1313 = vsel %vm472, %v1298, 0
        %v1316 = vsel %vm472, %v1304, 0
        %1318 = vmatprep.subr.mxu0 0.0
        %1319 = vmatpush1.msra.mxu0 %v454
        %1320 = vmatprep.subr.mxu0 0.0
        %1321 = vmatpush1.msra.mxu0 %v453
        %1322 = vmatprep.subr.mxu0 0.0
        %1323 = vmatpush1.msra.mxu0 %v452
        %1324 = vmatprep.subr.mxu0 0.0
        %1325 = vmatpush1.msra.mxu0 %v451
        %1326 = vmatprep.subr.mxu0 0.0
        %1327 = vmatpush1.msra.mxu0 %v450
        %1328 = vmatprep.subr.mxu0 0.0
        %1329 = vmatpush1.msra.mxu0 %v449
        %1330 = vmatprep.subr.mxu0 0.0
        %1331 = vmatpush1.msra.mxu0 %v448
        %1332 = vmatprep.subr.mxu0 0.0
        %1333 = vmatpush1.msra.mxu0 %v447
        %1334 = vmatprep.subr.mxu0 0.0
        %1335 = vmatpush1.msra.mxu0 %v446
        %1336 = vmatprep.subr.mxu0 0.0
        %1337 = vmatpush1.msra.mxu0 %v445
        %1338 = vmatprep.subr.mxu0 0.0
        %1339 = vmatpush1.msra.mxu0 %v444
        %1340 = vmatprep.subr.mxu0 0.0
        %1341 = vmatpush1.msra.mxu0 %v443
        %1342 = vmatprep.subr.mxu0 0.0
        %1343 = vmatpush1.msra.mxu0 %v442
        %1344 = vmatprep.subr.mxu0 0.0
        %1345 = vmatpush1.msra.mxu0 %v441
        %1346 = vmatprep.subr.mxu0 0.0
        %1347 = vmatpush1.msra.mxu0 %v440
        %1348 = vmatprep.subr.mxu0 0.0
        %1349 = vmatpush1.msra.mxu0 %v439
        %1350 = vmatprep.subr.mxu0 0.0
        %1351 = vmatpush2.msra.mxu0 0.0
        %1352 = vmatprep.subr.mxu0 0.0
        %1353 = vmatpush2.msra.mxu0 0.0
        %1354 = vmatprep.subr.mxu0 0.0
        %1355 = vmatpush2.msra.mxu0 0.0
        %1356 = vmatprep.subr.mxu0 0.0
        %1357 = vmatpush2.msra.mxu0 0.0
        %1358 = vmatprep.subr.mxu0 0.0
        %1359 = vmatpush2.msra.mxu0 0.0
        %1360 = vmatprep.subr.mxu0 0.0
        %1361 = vmatpush2.msra.mxu0 0.0
        %1362 = vmatprep.subr.mxu0 0.0
        %1363 = vmatpush2.msra.mxu0 0.0
        %1364 = vmatprep.subr.mxu0 0.0
        %1365 = vmatpush2.msra.mxu0 %v645
        %1366 = vmatprep.subr.mxu0 0.0
        %1367 = vmatpush2.msra.mxu0 %v462
        %1368 = vmatprep.subr.mxu0 0.0
        %1369 = vmatpush2.msra.mxu0 %v461
        %1370 = vmatprep.subr.mxu0 0.0
        %1371 = vmatpush2.msra.mxu0 %v460
        %1372 = vmatprep.subr.mxu0 0.0
        %1373 = vmatpush2.msra.mxu0 %v459
        %1374 = vmatprep.subr.mxu0 0.0
        %1375 = vmatpush2.msra.mxu0 %v458
        %1376 = vmatprep.subr.mxu0 0.0
        %1377 = vmatpush2.msra.mxu0 %v457
        %1378 = vmatprep.subr.mxu0 0.0
        %1379 = vmatpush2.msra.mxu0 %v456
        %1380 = vmatprep.subr.mxu0 0.0
        %1381 = vmatpush2.msra.mxu0 %v455
        %1382 = vmatprep.mubr.f32.mxu0 %v1313
        %1383 = vmatmul.mubr.f32.gmra.mxu0 %v1296
        %v1384 = vpop.f32.mrf.mxu0
        %v1385 = vadd.f32 0.0, %v1384
        %v1386 = vpop.f32.mrf.mxu0
        %1387 = vmatprep.mubr.f32.mxu0 %v1316
        %1388 = vmatmul.mubr.f32.gmra.mxu0 %v1302
        %v1389 = vpop.f32.mrf.mxu0
        %v1390 = vadd.f32 0.0, %v1389
        %v1391 = vpop.f32.mrf.mxu0
        %1392 = vdwg.mxu0
        %vm1393 = vcmask 130048
        %v1395 = vsel %vm1393, %v1306, 0
        %v1398 = vsel %vm1393, %v1307, 0
        %1400 = vmatprep.subr.mxu0 0.0
        %1401 = vmatpush1.msra.mxu0 0.0
        %1402 = vmatprep.subr.mxu0 0.0
        %1403 = vmatpush1.msra.mxu0 0.0
        %1404 = vmatprep.subr.mxu0 0.0
        %1405 = vmatpush1.msra.mxu0 0.0
        %1406 = vmatprep.subr.mxu0 0.0
        %1407 = vmatpush1.msra.mxu0 0.0
        %1408 = vmatprep.subr.mxu0 0.0
        %1409 = vmatpush1.msra.mxu0 0.0
        %1410 = vmatprep.subr.mxu0 0.0
        %1411 = vmatpush1.msra.mxu0 0.0
        %1412 = vmatprep.subr.mxu0 0.0
        %1413 = vmatpush1.msra.mxu0 0.0
        %1414 = vmatprep.subr.mxu0 0.0
        %1415 = vmatpush1.msra.mxu0 0.0
        %1416 = vmatprep.subr.mxu0 0.0
        %1417 = vmatpush1.msra.mxu0 0.0
        %1418 = vmatprep.subr.mxu0 0.0
        %1419 = vmatpush1.msra.mxu0 0.0
        %1420 = vmatprep.subr.mxu0 0.0
        %1421 = vmatpush1.msra.mxu0 0.0
        %1422 = vmatprep.subr.mxu0 0.0
        %1423 = vmatpush1.msra.mxu0 0.0
        %1424 = vmatprep.subr.mxu0 0.0
        %1425 = vmatpush1.msra.mxu0 0.0
        %1426 = vmatprep.subr.mxu0 0.0
        %1427 = vmatpush1.msra.mxu0 0.0
        %1428 = vmatprep.subr.mxu0 0.0
        %1429 = vmatpush1.msra.mxu0 %v1390
        %1430 = vmatprep.subr.mxu0 0.0
        %1431 = vmatpush1.msra.mxu0 %v1385
        %1432 = vmatprep.subr.mxu0 0.0
        %1433 = vmatpush2.msra.mxu0 0.0
        %1434 = vmatprep.subr.mxu0 0.0
        %1435 = vmatpush2.msra.mxu0 0.0
        %1436 = vmatprep.subr.mxu0 0.0
        %1437 = vmatpush2.msra.mxu0 0.0
        %1438 = vmatprep.subr.mxu0 0.0
        %1439 = vmatpush2.msra.mxu0 0.0
        %1440 = vmatprep.subr.mxu0 0.0
        %1441 = vmatpush2.msra.mxu0 0.0
        %1442 = vmatprep.subr.mxu0 0.0
        %1443 = vmatpush2.msra.mxu0 0.0
        %1444 = vmatprep.subr.mxu0 0.0
        %1445 = vmatpush2.msra.mxu0 0.0
        %1446 = vmatprep.subr.mxu0 0.0
        %1447 = vmatpush2.msra.mxu0 0.0
        %1448 = vmatprep.subr.mxu0 0.0
        %1449 = vmatpush2.msra.mxu0 0.0
        %1450 = vmatprep.subr.mxu0 0.0
        %1451 = vmatpush2.msra.mxu0 0.0
        %1452 = vmatprep.subr.mxu0 0.0
        %1453 = vmatpush2.msra.mxu0 0.0
        %1454 = vmatprep.subr.mxu0 0.0
        %1455 = vmatpush2.msra.mxu0 0.0
        %1456 = vmatprep.subr.mxu0 0.0
        %1457 = vmatpush2.msra.mxu0 0.0
        %1458 = vmatprep.subr.mxu0 0.0
        %1459 = vmatpush2.msra.mxu0 0.0
        %1460 = vmatprep.subr.mxu0 0.0
        %1461 = vmatpush2.msra.mxu0 0.0
        %1462 = vmatprep.subr.mxu0 0.0
        %1463 = vmatpush2.msra.mxu0 0.0
        %1464 = vmatprep.mubr.f32.mxu0 0.0
        %1465 = vmatmul.mubr.f32.gmra.mxu0 %v1395
        %v1466 = vpop.f32.mrf.mxu0
        %v1467 = vadd.f32 0.0, %v1466
        %v1468 = vpop.f32.mrf.mxu0
        %1469 = vmatprep.mubr.f32.mxu0 0.0
        %1470 = vmatmul.mubr.f32.gmra.mxu0 %v1398
        %v1471 = vpop.f32.mrf.mxu0
        %v1472 = vadd.f32 0.0, %v1471
        %v1473 = vpop.f32.mrf.mxu0
        %1474 = vdwg.mxu0
        %v1475 = vmul.f32 %v1467, 0.00043402778
        %v1476 = vmul.f32 %v1472, 0.00043402778
        %1478 = vset.pattern.permute.xlu0 0
        %1479 = vperm.xlu0 %1478, %v1475
        %v1480 = vpop.permute.xlu0 %1479
        %1483 = vset.pattern.permute.xlu0 0
        %1484 = vperm.xlu0 %1483, %v1476
        %v1485 = vpop.permute.xlu0 %1484
        %v1487 = vmul.f32 %v1480, %v800
        %v1488 = vmul.f32 %v1480, %v804
        %v1489 = vmul.f32 %v1485, %v800
        %v1490 = vmul.f32 %v1485, %v804
        %1491 = vset.pattern.permute.xlu0 1
        %1492 = vperm.xlu0 %1491, %v1475
        %v1493 = vpop.permute.xlu0 %1492
        %1495 = vset.pattern.permute.xlu0 1
        %1496 = vperm.xlu0 %1495, %v1476
        %v1497 = vpop.permute.xlu0 %1496
        %v1499 = vmul.f32 %v1493, %v814
        %v1500 = vmul.f32 %v1493, %v818
        %v1501 = vmul.f32 %v1497, %v814
        %v1502 = vmul.f32 %v1497, %v818
        %v1503 = vadd.f32 %v1487, %v1499
        %v1504 = vadd.f32 %v1488, %v1500
        %v1505 = vadd.f32 %v1489, %v1501
        %v1506 = vadd.f32 %v1490, %v1502
        %1507 = vset.pattern.permute.xlu0 2
        %1508 = vperm.xlu0 %1507, %v1475
        %v1509 = vpop.permute.xlu0 %1508
        %1511 = vset.pattern.permute.xlu0 2
        %1512 = vperm.xlu0 %1511, %v1476
        %v1513 = vpop.permute.xlu0 %1512
        %v1515 = vmul.f32 %v1509, %v830
        %v1516 = vmul.f32 %v1509, %v834
        %v1517 = vmul.f32 %v1513, %v830
        %v1518 = vmul.f32 %v1513, %v834
        %v1519 = vadd.f32 %v1503, %v1515
        %v1520 = vadd.f32 %v1504, %v1516
        %v1521 = vadd.f32 %v1505, %v1517
        %v1522 = vadd.f32 %v1506, %v1518
        %1523 = vset.pattern.permute.xlu0 3
        %1524 = vperm.xlu0 %1523, %v1475
        %v1525 = vpop.permute.xlu0 %1524
        %1527 = vset.pattern.permute.xlu0 3
        %1528 = vperm.xlu0 %1527, %v1476
        %v1529 = vpop.permute.xlu0 %1528
        %v1531 = vmul.f32 %v1525, %v846
        %v1532 = vmul.f32 %v1525, %v850
        %v1533 = vmul.f32 %v1529, %v846
        %v1534 = vmul.f32 %v1529, %v850
        %v1535 = vadd.f32 %v1519, %v1531
        %v1536 = vadd.f32 %v1520, %v1532
        %v1537 = vadd.f32 %v1521, %v1533
        %v1538 = vadd.f32 %v1522, %v1534
        %1539 = vset.pattern.permute.xlu0 4
        %1540 = vperm.xlu0 %1539, %v1475
        %v1541 = vpop.permute.xlu0 %1540
        %1543 = vset.pattern.permute.xlu0 4
        %1544 = vperm.xlu0 %1543, %v1476
        %v1545 = vpop.permute.xlu0 %1544
        %v1547 = vmul.f32 %v1541, %v862
        %v1548 = vmul.f32 %v1541, %v866
        %v1549 = vmul.f32 %v1545, %v862
        %v1550 = vmul.f32 %v1545, %v866
        %v1551 = vadd.f32 %v1535, %v1547
        %v1552 = vadd.f32 %v1536, %v1548
        %v1553 = vadd.f32 %v1537, %v1549
        %v1554 = vadd.f32 %v1538, %v1550
        %1555 = vset.pattern.permute.xlu0 5
        %1556 = vperm.xlu0 %1555, %v1475
        %v1557 = vpop.permute.xlu0 %1556
        %1559 = vset.pattern.permute.xlu0 5
        %1560 = vperm.xlu0 %1559, %v1476
        %v1561 = vpop.permute.xlu0 %1560
        %v1563 = vmul.f32 %v1557, %v878
        %v1564 = vmul.f32 %v1557, %v882
        %v1565 = vmul.f32 %v1561, %v878
        %v1566 = vmul.f32 %v1561, %v882
        %v1567 = vadd.f32 %v1551, %v1563
        %v1568 = vadd.f32 %v1552, %v1564
        %v1569 = vadd.f32 %v1553, %v1565
        %v1570 = vadd.f32 %v1554, %v1566
        %1571 = vset.pattern.permute.xlu0 6
        %1572 = vperm.xlu0 %1571, %v1475
        %v1573 = vpop.permute.xlu0 %1572
        %1575 = vset.pattern.permute.xlu0 6
        %1576 = vperm.xlu0 %1575, %v1476
        %v1577 = vpop.permute.xlu0 %1576
        %v1579 = vmul.f32 %v1573, %v894
        %v1580 = vmul.f32 %v1573, %v898
        %v1581 = vmul.f32 %v1577, %v894
        %v1582 = vmul.f32 %v1577, %v898
        %v1583 = vadd.f32 %v1567, %v1579
        %v1584 = vadd.f32 %v1568, %v1580
        %v1585 = vadd.f32 %v1569, %v1581
        %v1586 = vadd.f32 %v1570, %v1582
        %1587 = vset.pattern.permute.xlu0 7
        %1588 = vperm.xlu0 %1587, %v1475
        %v1589 = vpop.permute.xlu0 %1588
        %1591 = vset.pattern.permute.xlu0 7
        %1592 = vperm.xlu0 %1591, %v1476
        %v1593 = vpop.permute.xlu0 %1592
        %v1595 = vmul.f32 %v1589, %v910
        %v1596 = vmul.f32 %v1589, %v914
        %v1597 = vmul.f32 %v1593, %v910
        %v1598 = vmul.f32 %v1593, %v914
        %v1599 = vadd.f32 %v1583, %v1595
        %v1600 = vadd.f32 %v1584, %v1596
        %v1601 = vadd.f32 %v1585, %v1597
        %v1602 = vadd.f32 %v1586, %v1598
        %v1603 = vsub.f32 %v1296, %v1599
        %v1604 = vsub.f32 %v1298, %v1600
        %v1605 = vsub.f32 %v1302, %v1601
        %v1606 = vsub.f32 %v1304, %v1602
        %v1607 = vmul.f32 %v1603, %v1603
        %v1608 = vmul.f32 %v1604, %v1604
        %v1609 = vmul.f32 %v1605, %v1605
        %v1610 = vmul.f32 %v1606, %v1606
        %v1612 = vsel %vm472, %v1608, 0
        %v1615 = vsel %vm472, %v1610, 0
        %1617 = vmatprep.subr.mxu0 0.0
        %1618 = vmatpush1.msra.mxu0 %v454
        %1619 = vmatprep.subr.mxu0 0.0
        %1620 = vmatpush1.msra.mxu0 %v453
        %1621 = vmatprep.subr.mxu0 0.0
        %1622 = vmatpush1.msra.mxu0 %v452
        %1623 = vmatprep.subr.mxu0 0.0
        %1624 = vmatpush1.msra.mxu0 %v451
        %1625 = vmatprep.subr.mxu0 0.0
        %1626 = vmatpush1.msra.mxu0 %v450
        %1627 = vmatprep.subr.mxu0 0.0
        %1628 = vmatpush1.msra.mxu0 %v449
        %1629 = vmatprep.subr.mxu0 0.0
        %1630 = vmatpush1.msra.mxu0 %v448
        %1631 = vmatprep.subr.mxu0 0.0
        %1632 = vmatpush1.msra.mxu0 %v447
        %1633 = vmatprep.subr.mxu0 0.0
        %1634 = vmatpush1.msra.mxu0 %v446
        %1635 = vmatprep.subr.mxu0 0.0
        %1636 = vmatpush1.msra.mxu0 %v445
        %1637 = vmatprep.subr.mxu0 0.0
        %1638 = vmatpush1.msra.mxu0 %v444
        %1639 = vmatprep.subr.mxu0 0.0
        %1640 = vmatpush1.msra.mxu0 %v443
        %1641 = vmatprep.subr.mxu0 0.0
        %1642 = vmatpush1.msra.mxu0 %v442
        %1643 = vmatprep.subr.mxu0 0.0
        %1644 = vmatpush1.msra.mxu0 %v441
        %1645 = vmatprep.subr.mxu0 0.0
        %1646 = vmatpush1.msra.mxu0 %v440
        %1647 = vmatprep.subr.mxu0 0.0
        %1648 = vmatpush1.msra.mxu0 %v439
        %1649 = vmatprep.subr.mxu0 0.0
        %1650 = vmatpush2.msra.mxu0 0.0
        %1651 = vmatprep.subr.mxu0 0.0
        %1652 = vmatpush2.msra.mxu0 0.0
        %1653 = vmatprep.subr.mxu0 0.0
        %1654 = vmatpush2.msra.mxu0 0.0
        %1655 = vmatprep.subr.mxu0 0.0
        %1656 = vmatpush2.msra.mxu0 0.0
        %1657 = vmatprep.subr.mxu0 0.0
        %1658 = vmatpush2.msra.mxu0 0.0
        %1659 = vmatprep.subr.mxu0 0.0
        %1660 = vmatpush2.msra.mxu0 0.0
        %1661 = vmatprep.subr.mxu0 0.0
        %1662 = vmatpush2.msra.mxu0 0.0
        %1663 = vmatprep.subr.mxu0 0.0
        %1664 = vmatpush2.msra.mxu0 %v645
        %1665 = vmatprep.subr.mxu0 0.0
        %1666 = vmatpush2.msra.mxu0 %v462
        %1667 = vmatprep.subr.mxu0 0.0
        %1668 = vmatpush2.msra.mxu0 %v461
        %1669 = vmatprep.subr.mxu0 0.0
        %1670 = vmatpush2.msra.mxu0 %v460
        %1671 = vmatprep.subr.mxu0 0.0
        %1672 = vmatpush2.msra.mxu0 %v459
        %1673 = vmatprep.subr.mxu0 0.0
        %1674 = vmatpush2.msra.mxu0 %v458
        %1675 = vmatprep.subr.mxu0 0.0
        %1676 = vmatpush2.msra.mxu0 %v457
        %1677 = vmatprep.subr.mxu0 0.0
        %1678 = vmatpush2.msra.mxu0 %v456
        %1679 = vmatprep.subr.mxu0 0.0
        %1680 = vmatpush2.msra.mxu0 %v455
        %1681 = vmatprep.mubr.f32.mxu0 %v1612
        %1682 = vmatmul.mubr.f32.gmra.mxu0 %v1607
        %v1683 = vpop.f32.mrf.mxu0
        %v1684 = vadd.f32 0.0, %v1683
        %v1685 = vpop.f32.mrf.mxu0
        %1686 = vmatprep.mubr.f32.mxu0 %v1615
        %1687 = vmatmul.mubr.f32.gmra.mxu0 %v1609
        %v1688 = vpop.f32.mrf.mxu0
        %v1689 = vadd.f32 0.0, %v1688
        %v1690 = vpop.f32.mrf.mxu0
        %1691 = vdwg.mxu0
        %1692 = vmatprep.subr.mxu0 0.0
        %1693 = vmatpush1.msra.mxu0 0.0
        %1694 = vmatprep.subr.mxu0 0.0
        %1695 = vmatpush1.msra.mxu0 0.0
        %1696 = vmatprep.subr.mxu0 0.0
        %1697 = vmatpush1.msra.mxu0 0.0
        %1698 = vmatprep.subr.mxu0 0.0
        %1699 = vmatpush1.msra.mxu0 0.0
        %1700 = vmatprep.subr.mxu0 0.0
        %1701 = vmatpush1.msra.mxu0 0.0
        %1702 = vmatprep.subr.mxu0 0.0
        %1703 = vmatpush1.msra.mxu0 0.0
        %1704 = vmatprep.subr.mxu0 0.0
        %1705 = vmatpush1.msra.mxu0 0.0
        %1706 = vmatprep.subr.mxu0 0.0
        %1707 = vmatpush1.msra.mxu0 0.0
        %1708 = vmatprep.subr.mxu0 0.0
        %1709 = vmatpush1.msra.mxu0 0.0
        %1710 = vmatprep.subr.mxu0 0.0
        %1711 = vmatpush1.msra.mxu0 0.0
        %1712 = vmatprep.subr.mxu0 0.0
        %1713 = vmatpush1.msra.mxu0 0.0
        %1714 = vmatprep.subr.mxu0 0.0
        %1715 = vmatpush1.msra.mxu0 0.0
        %1716 = vmatprep.subr.mxu0 0.0
        %1717 = vmatpush1.msra.mxu0 0.0
        %1718 = vmatprep.subr.mxu0 0.0
        %1719 = vmatpush1.msra.mxu0 0.0
        %1720 = vmatprep.subr.mxu0 0.0
        %1721 = vmatpush1.msra.mxu0 %v1689
        %1722 = vmatprep.subr.mxu0 0.0
        %1723 = vmatpush1.msra.mxu0 %v1684
        %1724 = vmatprep.subr.mxu0 0.0
        %1725 = vmatpush2.msra.mxu0 0.0
        %1726 = vmatprep.subr.mxu0 0.0
        %1727 = vmatpush2.msra.mxu0 0.0
        %1728 = vmatprep.subr.mxu0 0.0
        %1729 = vmatpush2.msra.mxu0 0.0
        %1730 = vmatprep.subr.mxu0 0.0
        %1731 = vmatpush2.msra.mxu0 0.0
        %1732 = vmatprep.subr.mxu0 0.0
        %1733 = vmatpush2.msra.mxu0 0.0
        %1734 = vmatprep.subr.mxu0 0.0
        %1735 = vmatpush2.msra.mxu0 0.0
        %1736 = vmatprep.subr.mxu0 0.0
        %1737 = vmatpush2.msra.mxu0 0.0
        %1738 = vmatprep.subr.mxu0 0.0
        %1739 = vmatpush2.msra.mxu0 0.0
        %1740 = vmatprep.subr.mxu0 0.0
        %1741 = vmatpush2.msra.mxu0 0.0
        %1742 = vmatprep.subr.mxu0 0.0
        %1743 = vmatpush2.msra.mxu0 0.0
        %1744 = vmatprep.subr.mxu0 0.0
        %1745 = vmatpush2.msra.mxu0 0.0
        %1746 = vmatprep.subr.mxu0 0.0
        %1747 = vmatpush2.msra.mxu0 0.0
        %1748 = vmatprep.subr.mxu0 0.0
        %1749 = vmatpush2.msra.mxu0 0.0
        %1750 = vmatprep.subr.mxu0 0.0
        %1751 = vmatpush2.msra.mxu0 0.0
        %1752 = vmatprep.subr.mxu0 0.0
        %1753 = vmatpush2.msra.mxu0 0.0
        %1754 = vmatprep.subr.mxu0 0.0
        %1755 = vmatpush2.msra.mxu0 0.0
        %1756 = vmatprep.mubr.f32.mxu0 0.0
        %1757 = vmatmul.mubr.f32.gmra.mxu0 %v1395
        %v1758 = vpop.f32.mrf.mxu0
        %v1759 = vadd.f32 0.0, %v1758
        %v1760 = vpop.f32.mrf.mxu0
        %1761 = vmatprep.mubr.f32.mxu0 0.0
        %1762 = vmatmul.mubr.f32.gmra.mxu0 %v1398
        %v1763 = vpop.f32.mrf.mxu0
        %v1764 = vadd.f32 0.0, %v1763
        %v1765 = vpop.f32.mrf.mxu0
        %1766 = vdwg.mxu0
        %v1767 = vmul.f32 %v1759, 0.00043402778
        %v1768 = vmul.f32 %v1764, 0.00043402778
        %v1769 = vadd.f32 %v1767, 1e-05
        %v1770 = vadd.f32 %v1768, 1e-05
        %v1771 = vrsqrt.pop %v1769
        %v1772 = vrsqrt.pop %v1770
        %1774 = vset.pattern.permute.xlu0 0
        %1775 = vperm.xlu0 %1774, %v1771
        %v1776 = vpop.permute.xlu0 %1775
        %1779 = vset.pattern.permute.xlu0 0
        %1780 = vperm.xlu0 %1779, %v1772
        %v1781 = vpop.permute.xlu0 %1780
        %v1783 = vmul.f32 %v1776, %v800
        %v1784 = vmul.f32 %v1776, %v804
        %v1785 = vmul.f32 %v1781, %v800
        %v1786 = vmul.f32 %v1781, %v804
        %1787 = vset.pattern.permute.xlu0 1
        %1788 = vperm.xlu0 %1787, %v1771
        %v1789 = vpop.permute.xlu0 %1788
        %1791 = vset.pattern.permute.xlu0 1
        %1792 = vperm.xlu0 %1791, %v1772
        %v1793 = vpop.permute.xlu0 %1792
        %v1795 = vmul.f32 %v1789, %v814
        %v1796 = vmul.f32 %v1789, %v818
        %v1797 = vmul.f32 %v1793, %v814
        %v1798 = vmul.f32 %v1793, %v818
        %v1799 = vadd.f32 %v1783, %v1795
        %v1800 = vadd.f32 %v1784, %v1796
        %v1801 = vadd.f32 %v1785, %v1797
        %v1802 = vadd.f32 %v1786, %v1798
        %1803 = vset.pattern.permute.xlu0 2
        %1804 = vperm.xlu0 %1803, %v1771
        %v1805 = vpop.permute.xlu0 %1804
        %1807 = vset.pattern.permute.xlu0 2
        %1808 = vperm.xlu0 %1807, %v1772
        %v1809 = vpop.permute.xlu0 %1808
        %v1811 = vmul.f32 %v1805, %v830
        %v1812 = vmul.f32 %v1805, %v834
        %v1813 = vmul.f32 %v1809, %v830
        %v1814 = vmul.f32 %v1809, %v834
        %v1815 = vadd.f32 %v1799, %v1811
        %v1816 = vadd.f32 %v1800, %v1812
        %v1817 = vadd.f32 %v1801, %v1813
        %v1818 = vadd.f32 %v1802, %v1814
        %1819 = vset.pattern.permute.xlu0 3
        %1820 = vperm.xlu0 %1819, %v1771
        %v1821 = vpop.permute.xlu0 %1820
        %1823 = vset.pattern.permute.xlu0 3
        %1824 = vperm.xlu0 %1823, %v1772
        %v1825 = vpop.permute.xlu0 %1824
        %v1827 = vmul.f32 %v1821, %v846
        %v1828 = vmul.f32 %v1821, %v850
        %v1829 = vmul.f32 %v1825, %v846
        %v1830 = vmul.f32 %v1825, %v850
        %v1831 = vadd.f32 %v1815, %v1827
        %v1832 = vadd.f32 %v1816, %v1828
        %v1833 = vadd.f32 %v1817, %v1829
        %v1834 = vadd.f32 %v1818, %v1830
        %1835 = vset.pattern.permute.xlu0 4
        %1836 = vperm.xlu0 %1835, %v1771
        %v1837 = vpop.permute.xlu0 %1836
        %1839 = vset.pattern.permute.xlu0 4
        %1840 = vperm.xlu0 %1839, %v1772
        %v1841 = vpop.permute.xlu0 %1840
        %v1843 = vmul.f32 %v1837, %v862
        %v1844 = vmul.f32 %v1837, %v866
        %v1845 = vmul.f32 %v1841, %v862
        %v1846 = vmul.f32 %v1841, %v866
        %v1847 = vadd.f32 %v1831, %v1843
        %v1848 = vadd.f32 %v1832, %v1844
        %v1849 = vadd.f32 %v1833, %v1845
        %v1850 = vadd.f32 %v1834, %v1846
        %1851 = vset.pattern.permute.xlu0 5
        %1852 = vperm.xlu0 %1851, %v1771
        %v1853 = vpop.permute.xlu0 %1852
        %1855 = vset.pattern.permute.xlu0 5
        %1856 = vperm.xlu0 %1855, %v1772
        %v1857 = vpop.permute.xlu0 %1856
        %v1859 = vmul.f32 %v1853, %v878
        %v1860 = vmul.f32 %v1853, %v882
        %v1861 = vmul.f32 %v1857, %v878
        %v1862 = vmul.f32 %v1857, %v882
        %v1863 = vadd.f32 %v1847, %v1859
        %v1864 = vadd.f32 %v1848, %v1860
        %v1865 = vadd.f32 %v1849, %v1861
        %v1866 = vadd.f32 %v1850, %v1862
        %1867 = vset.pattern.permute.xlu0 6
        %1868 = vperm.xlu0 %1867, %v1771
        %v1869 = vpop.permute.xlu0 %1868
        %1871 = vset.pattern.permute.xlu0 6
        %1872 = vperm.xlu0 %1871, %v1772
        %v1873 = vpop.permute.xlu0 %1872
        %v1875 = vmul.f32 %v1869, %v894
        %v1876 = vmul.f32 %v1869, %v898
        %v1877 = vmul.f32 %v1873, %v894
        %v1878 = vmul.f32 %v1873, %v898
        %v1879 = vadd.f32 %v1863, %v1875
        %v1880 = vadd.f32 %v1864, %v1876
        %v1881 = vadd.f32 %v1865, %v1877
        %v1882 = vadd.f32 %v1866, %v1878
        %1883 = vset.pattern.permute.xlu0 7
        %1884 = vperm.xlu0 %1883, %v1771
        %v1885 = vpop.permute.xlu0 %1884
        %1887 = vset.pattern.permute.xlu0 7
        %1888 = vperm.xlu0 %1887, %v1772
        %v1889 = vpop.permute.xlu0 %1888
        %v1891 = vmul.f32 %v1885, %v910
        %v1892 = vmul.f32 %v1885, %v914
        %v1893 = vmul.f32 %v1889, %v910
        %v1894 = vmul.f32 %v1889, %v914
        %v1895 = vadd.f32 %v1879, %v1891
        %v1896 = vadd.f32 %v1880, %v1892
        %v1897 = vadd.f32 %v1881, %v1893
        %v1898 = vadd.f32 %v1882, %v1894
        %v1899 = vmul.f32 %v1603, %v1895
        %v1900 = vmul.f32 %v1604, %v1896
        %v1901 = vmul.f32 %v1605, %v1897
        %v1902 = vmul.f32 %v1606, %v1898
        %1904 = vset.pattern.permute.xlu0 0
        %1905 = vperm.xlu0 %1904, %v1308
        %v1906 = vpop.permute.xlu0 %1905
        %1909 = vset.pattern.permute.xlu0 0
        %1910 = vperm.xlu0 %1909, %v1309
        %v1911 = vpop.permute.xlu0 %1910
        %v1913 = vmul.f32 %v1899, %v1906
        %v1914 = vmul.f32 %v1900, %v1906
        %v1915 = vmul.f32 %v1901, %v1911
        %v1916 = vmul.f32 %v1902, %v1911
        %1918 = vset.pattern.permute.xlu0 0
        %1919 = vperm.xlu0 %1918, %v1310
        %v1920 = vpop.permute.xlu0 %1919
        %1923 = vset.pattern.permute.xlu0 0
        %1924 = vperm.xlu0 %1923, %v1311
        %v1925 = vpop.permute.xlu0 %1924
        %v1927 = vadd.f32 %v1913, %v1920
        %v1928 = vadd.f32 %v1914, %v1920
        %v1929 = vadd.f32 %v1915, %v1925
        %v1930 = vadd.f32 %v1916, %v1925
        %v1931 = vld [vmem:[%s7] sm:$0xff]
        %v1932 = vld [vmem:[%s8] sm:$0xff]
        %1934 = vset.pattern.permute.xlu0 0
        %1935 = vperm.xlu0 %1934, %v1932
        %v1936 = vpop.permute.xlu0 %1935
        %v1939 = vsel %vm1393, %v1931, 0
        %1941 = vmatprep.subr.mxu0 0.0
        %1942 = vmatpush1.msra.mxu0 0.0
        %1943 = vmatprep.subr.mxu0 0.0
        %1944 = vmatpush1.msra.mxu0 0.0
        %1945 = vmatprep.subr.mxu0 0.0
        %1946 = vmatpush1.msra.mxu0 0.0
        %1947 = vmatprep.subr.mxu0 0.0
        %1948 = vmatpush1.msra.mxu0 0.0
        %1949 = vmatprep.subr.mxu0 0.0
        %1950 = vmatpush1.msra.mxu0 0.0
        %1951 = vmatprep.subr.mxu0 0.0
        %1952 = vmatpush1.msra.mxu0 0.0
        %1953 = vmatprep.subr.mxu0 0.0
        %1954 = vmatpush1.msra.mxu0 0.0
        %1955 = vmatprep.subr.mxu0 0.0
        %1956 = vmatpush1.msra.mxu0 0.0
        %1957 = vmatprep.subr.mxu0 0.0
        %1958 = vmatpush1.msra.mxu0 0.0
        %1959 = vmatprep.subr.mxu0 0.0
        %1960 = vmatpush1.msra.mxu0 0.0
        %1961 = vmatprep.subr.mxu0 0.0
        %1962 = vmatpush1.msra.mxu0 0.0
        %1963 = vmatprep.subr.mxu0 0.0
        %1964 = vmatpush1.msra.mxu0 0.0
        %1965 = vmatprep.subr.mxu0 0.0
        %1966 = vmatpush1.msra.mxu0 0.0
        %1967 = vmatprep.subr.mxu0 0.0
        %1968 = vmatpush1.msra.mxu0 0.0
        %1969 = vmatprep.subr.mxu0 %v1930
        %1970 = vmatpush1.msra.mxu0 %v1929
        %1971 = vmatprep.subr.mxu0 %v1928
        %1972 = vmatpush1.msra.mxu0 %v1927
        %1973 = vmatprep.subr.mxu0 0.0
        %1974 = vmatpush2.msra.mxu0 0.0
        %1975 = vmatprep.subr.mxu0 0.0
        %1976 = vmatpush2.msra.mxu0 0.0
        %1977 = vmatprep.subr.mxu0 0.0
        %1978 = vmatpush2.msra.mxu0 0.0
        %1979 = vmatprep.subr.mxu0 0.0
        %1980 = vmatpush2.msra.mxu0 0.0
        %1981 = vmatprep.subr.mxu0 0.0
        %1982 = vmatpush2.msra.mxu0 0.0
        %1983 = vmatprep.subr.mxu0 0.0
        %1984 = vmatpush2.msra.mxu0 0.0
        %1985 = vmatprep.subr.mxu0 0.0
        %1986 = vmatpush2.msra.mxu0 0.0
        %1987 = vmatprep.subr.mxu0 0.0
        %1988 = vmatpush2.msra.mxu0 0.0
        %1989 = vmatprep.subr.mxu0 0.0
        %1990 = vmatpush2.msra.mxu0 0.0
        %1991 = vmatprep.subr.mxu0 0.0
        %1992 = vmatpush2.msra.mxu0 0.0
        %1993 = vmatprep.subr.mxu0 0.0
        %1994 = vmatpush2.msra.mxu0 0.0
        %1995 = vmatprep.subr.mxu0 0.0
        %1996 = vmatpush2.msra.mxu0 0.0
        %1997 = vmatprep.subr.mxu0 0.0
        %1998 = vmatpush2.msra.mxu0 0.0
        %1999 = vmatprep.subr.mxu0 0.0
        %2000 = vmatpush2.msra.mxu0 0.0
        %2001 = vmatprep.subr.mxu0 0.0
        %2002 = vmatpush2.msra.mxu0 0.0
        %2003 = vmatprep.subr.mxu0 0.0
        %2004 = vmatpush2.msra.mxu0 0.0
        %2005 = vmatprep.mubr.f32.mxu0 0.0
        %2006 = vmatmul.mubr.f32.gmra.mxu0 %v1939
        %v2007 = vpop.f32.mrf.mxu0
        %v2008 = vadd.f32 %v1936, %v2007
        %v2009 = vpop.f32.mrf.mxu0
        %v2010 = vadd.f32 %v1936, %v2009
        %2011 = vdwg.mxu0
        %v2012 = vadd.f32 %v2008, %v480
        %v2013 = vadd.f32 %v2010, %v481
        %2014 = vst [vmem:[%s433] sm:$0xff] %v2012
        %2015 = vst.msk [vmem:[%s433 + $0x8] sm:$0xff] %vm472, %v2013
        %s2016 = sand.u32 %s313, 1
        %s2017 = scalar_lea.sflag [#allocation3], %s2016
        %s2018 = sand.u32 %s313, 1
        %s2019 = smul.addr %s2018, 16
        %s2020 = scalar_lea.vmem [#allocation2], %s2019
        // Predicated region
        $region73: #{tpu_custom_call.1} parent=71 // pred_check
          %p2021 = pneg %p323
        $region74: #{tpu_custom_call.1} parent=71 // pred_check_branch
          %2023 = sbr.rel (%p2021) target = $region76
        $region75: #{tpu_custom_call.1} parent=71 // pred_region
          %s2025 = ssub.s32 256, 256
          %2026 = vsyncadd %s2017, %s2025
          %s2027 = smul.addr %s27, 2
          %s2028 = smul.addr %s2027, 128
          %s2029 = scalar_lea.hbm %s13, %s2028
          %s2031 = sshll.u32 %s2020, 4
          %s2032 = int_to_ptr.vmem [resolvable:$true] %s2031
          %2034 = dma.vmem_to_hbm [thread:$0]  %s2032, 256, %s2029, %s2017
        $region76: #{tpu_custom_call.1} parent=71 // pred_fallthru
          _
      $region72: #{tpu_custom_call.1} parent=5 // pred_fallthru
        _
      %p2035 = scmp.le.s32.totalorder 2, %s22
      // Predicated region
      $region77: #{tpu_custom_call.1} parent=5 // pred_check
        %p2036 = pneg %p2035
      $region78: #{tpu_custom_call.1} parent=5 // pred_check_branch
        %2038 = sbr.rel (%p2036) target = $region80
      $region79: #{tpu_custom_call.1} parent=5 // pred_region
        %s2039 = ssub.s32 %s22, 2
        // Predicated region
        $region81: #{tpu_custom_call.1} parent=79 // pred_check
          %p2040 = pneg %p329
        $region82: #{tpu_custom_call.1} parent=79 // pred_check_branch
          %2042 = sbr.rel (%p2040) target = $region84
        $region83: #{tpu_custom_call.1} parent=79 // pred_region
          %s2043 = sand.u32 %s314, 1
          %s2044 = scalar_lea.sflag [#allocation3], %s2043
          %s2045 = sand.u32 %s314, 1
          %s2046 = smul.addr %s2045, 16
          %s2047 = scalar_lea.vmem [#allocation2], %s2046
          %2048 = dma.done %s2044, 256
        $region84: #{tpu_custom_call.1} parent=79 // pred_fallthru
          _
      $region80: #{tpu_custom_call.1} parent=5 // pred_fallthru
        _
    $region6: #{tpu_custom_call.1} parent=1 // loop_footer
      %s26 = sadd.s32 1, %s22
    $region7: #{tpu_custom_call.1} parent=1 // loop_footer_branch
      %21 = sbr.rel target = $region3
    $region8: #{tpu_custom_call.1} parent=1 // loop_exit
      _
    %2049 = vsyncpa [#allocation3], 1
    %s2050 = scalar_lea.sflag [#allocation3], 1
    %2051 = vsyncpa %s2050, 1

</llo_original>
